<compile_context>
chip_gen: v7x
topology: tpu7x:2x2x1
jax: 0.10.0
libtpu: 0.0.40
codegen_flags: <defaults>
</compile_context>

<pallas_src>
import jax
import jax.numpy as jnp
from jax import lax
from jax.experimental import pallas as pl
from jax.experimental.pallas import tpu as pltpu

IN_F = 3      # fc1 in_features
HID = 64      # fc1 out_features / fc2 in_features
OUT_F = 2     # fc2 out_features

LANE_ALIGN = 256   # batch-tile alignment (multiple of 128-lane / MXU granule)
CHUNK = 256        # inner lane-chunk: h = (64, 256) f32 = 16 vregs, stays local
TB_MAX = 16384     # batch-tile cap (I/O tiles ~640 KB double-buffered, tiny vs VMEM)


def _mlp_kernel(zt_ref, w1_ref, b1_ref, w2_ref, b2_ref, ot_ref):
    # zt_ref: (3, TB)    input features, batch along lanes (streamed)
    # w1_ref: (64, 3)    torch-convention W1 (out, in)      (VMEM resident)
    # b1_ref: (64, 1)
    # w2_ref: (2, 64)    torch-convention W2 (out, in)
    # b2_ref: (2, 1)
    # ot_ref: (2, TB)    outputs, batch along lanes
    w1 = w1_ref[...]
    b1 = b1_ref[...]
    w2 = w2_ref[...]
    b2 = b2_ref[...]
    tb = zt_ref.shape[-1]
    n_chunks = tb // CHUNK   # static; tb is always a multiple of CHUNK

    def body(c, carry):
        start = pl.multiple_of(c * CHUNK, CHUNK)
        zt = zt_ref[:, pl.ds(start, CHUNK)]                         # (3, CHUNK)
        # fc1 on the MXU (MXU has huge slack; keeps the 4-wide VALU free).
        h = jnp.dot(w1, zt, preferred_element_type=jnp.float32,
                    precision=lax.Precision.HIGHEST) + b1           # (64, CHUNK)
        h = jnp.maximum(h, 0.0)                                     # ReLU (VPU)
        # fc2 on the MXU, lane-dense output chunk.
        o = jnp.dot(w2, h, preferred_element_type=jnp.float32,
                    precision=lax.Precision.HIGHEST) + b2           # (2, CHUNK)
        ot_ref[:, pl.ds(start, CHUNK)] = o
        return carry

    lax.fori_loop(0, n_chunks, body, 0)


def _round_up(x, m):
    return ((x + m - 1) // m) * m


@jax.jit
def interpolator_forward(z, w1, b1, w2, b2):
    """Interpolator forward: relu(z @ W1^T + b1) @ W2^T + b2.

    z : (B, 3); w1: (64, 3); b1: (64,); w2: (2, 64); b2: (2,).  Returns (B, 2) f32.
    """
    B = z.shape[0]
    # Batch tile: large (amortizes per-grid-step overhead), multiple of 256, capped at
    # TB_MAX; if a single block would cover everything, split into 2 so v7x's two
    # TensorCores both get work on the "parallel" grid axis.
    tb = min(TB_MAX, _round_up(max(B, 1), LANE_ALIGN))
    if tb > LANE_ALIGN and _round_up(B, tb) == tb:
        tb = _round_up(tb // 2, LANE_ALIGN)
    b_pad = _round_up(B, tb)

    # Batch-in-lanes transpose + lane padding (wrapper-side XLA copies; kept because
    # the public contract is (B, 3) -> (B, 2).  In a fused pipeline, keep the
    # transposed layout end-to-end to avoid these passes).
    zt = jnp.pad(z.astype(jnp.float32).T, ((0, 0), (0, b_pad - B)))     # (3, b_pad)
    w1c = w1.astype(jnp.float32)                                        # (64, 3)
    b1c = b1.astype(jnp.float32).reshape(HID, 1)                        # (64, 1)
    w2c = w2.astype(jnp.float32)                                        # (2, 64)
    b2c = b2.astype(jnp.float32).reshape(OUT_F, 1)                      # (2, 1)

    cost = pl.CostEstimate(
        flops=2 * B * (HID * IN_F + OUT_F * HID),
        transcendentals=0,
        bytes_accessed=4 * ((IN_F + OUT_F) * b_pad
                            + HID * IN_F + HID + OUT_F * HID + OUT_F),
    )

    ot = pl.pallas_call(
        _mlp_kernel,
        out_shape=jax.ShapeDtypeStruct((OUT_F, b_pad), jnp.float32),
        grid_spec=pltpu.PrefetchScalarGridSpec(
            num_scalar_prefetch=0,
            grid=(b_pad // tb,),
            in_specs=[
                pl.BlockSpec((IN_F, tb), lambda i: (0, i)),    # z^T tile (streamed)
                pl.BlockSpec((HID, IN_F), lambda i: (0, 0)),   # W1 (resident)
                pl.BlockSpec((HID, 1), lambda i: (0, 0)),      # b1 (resident)
                pl.BlockSpec((OUT_F, HID), lambda i: (0, 0)),  # W2 (resident)
                pl.BlockSpec((OUT_F, 1), lambda i: (0, 0)),    # b2 (resident)
            ],
            out_specs=pl.BlockSpec((OUT_F, tb), lambda i: (0, i)),
        ),
        compiler_params=pltpu.CompilerParams(
            dimension_semantics=("parallel",)),
        cost_estimate=cost,
    )(zt, w1c, b1c, w2c, b2c)

    # Slice off padded lanes, transpose back to (B, 2).
    return ot[:, :B].T


def _init_params(key):
    """torch.nn.Linear-style init: U(-1/sqrt(fan_in), +1/sqrt(fan_in))."""
    k1, k2, k3, k4 = jax.random.split(key, 4)
    bound1 = 1.0 / (IN_F ** 0.5)
    bound2 = 1.0 / (HID ** 0.5)
    w1 = jax.random.uniform(k1, (HID, IN_F), jnp.float32, -bound1, bound1)
    b1 = jax.random.uniform(k2, (HID,), jnp.float32, -bound1, bound1)
    w2 = jax.random.uniform(k3, (OUT_F, HID), jnp.float32, -bound2, bound2)
    b2 = jax.random.uniform(k4, (OUT_F,), jnp.float32, -bound2, bound2)
    return w1, b1, w2, b2


def _reference(z, w1, b1, w2, b2):
    """Pure-JAX reference (torch convention: z @ W.T + b), exact-ish f32."""
    h = jnp.maximum(jnp.dot(z, w1.T, precision=lax.Precision.HIGHEST) + b1, 0.0)
    return jnp.dot(h, w2.T, precision=lax.Precision.HIGHEST) + b2


if __name__ == "__main__":
    key = jax.random.PRNGKey(0)
    k_z, k_p, k_z2 = jax.random.split(key, 3)
    w1, b1, w2, b2 = _init_params(k_p)

    # Small-shape check (B = 8).
    z = jax.random.normal(k_z, (8, IN_F), jnp.float32)
    out = jax.block_until_ready(interpolator_forward(z, w1, b1, w2, b2))
    ref = _reference(z, w1, b1, w2, b2)
    assert out.shape == (8, OUT_F), out.shape
    assert jnp.allclose(out, ref, atol=1e-4, rtol=1e-4), (
        f"max abs err {jnp.max(jnp.abs(out - ref))}")

    # Multi-block / multi-chunk check (lane padding, 2 grid blocks, inner loop).
    z2 = jax.random.normal(k_z2, (513, IN_F), jnp.float32)
    out2 = jax.block_until_ready(interpolator_forward(z2, w1, b1, w2, b2))
    ref2 = _reference(z2, w1, b1, w2, b2)
    assert out2.shape == (513, OUT_F), out2.shape
    assert jnp.allclose(out2, ref2, atol=1e-4, rtol=1e-4), (
        f"max abs err {jnp.max(jnp.abs(out2 - ref2))}")

    print("KERNEL_OK")
</pallas_src>

<mosaic_0001>
module attributes {stable_mosaic.version = 11 : i64} {
  func.func @_mlp_kernel(%arg0: i32, %arg1: memref<3x256xf32, #tpu.memory_space<vmem>>, %arg2: memref<64x3xf32, #tpu.memory_space<vmem>>, %arg3: memref<64x1xf32, #tpu.memory_space<vmem>>, %arg4: memref<2x64xf32, #tpu.memory_space<vmem>>, %arg5: memref<2x1xf32, #tpu.memory_space<vmem>>, %arg6: memref<2x256xf32, #tpu.memory_space<vmem>>) attributes {dimension_semantics = [#tpu.dimension_semantics<parallel>], iteration_bounds = array<i64: 1>, scalar_prefetch = 0 : i64, scratch_operands = 0 : i64, tpu.core_type = #tpu.core_type<tc>, window_params = [{transform_indices = @transform_0, window_bounds = array<i64: 3, 256>}, {pipeline_mode = #tpu.pipeline_mode<synchronous>, transform_indices = @transform_1, window_bounds = array<i64: 64, 3>}, {pipeline_mode = #tpu.pipeline_mode<synchronous>, transform_indices = @transform_2, window_bounds = array<i64: 64, 1>}, {pipeline_mode = #tpu.pipeline_mode<synchronous>, transform_indices = @transform_3, window_bounds = array<i64: 2, 64>}, {pipeline_mode = #tpu.pipeline_mode<synchronous>, transform_indices = @transform_4, window_bounds = array<i64: 2, 1>}, {transform_indices = @transform_5, window_bounds = array<i64: 2, 256>}]} {
    %c0 = arith.constant 0 : index
    %c0_0 = arith.constant 0 : index
    %0 = vector.load %arg2[%c0, %c0_0] : memref<64x3xf32, #tpu.memory_space<vmem>>, vector<64x3xf32>
    %c0_1 = arith.constant 0 : index
    %c0_2 = arith.constant 0 : index
    %1 = vector.load %arg3[%c0_1, %c0_2] : memref<64x1xf32, #tpu.memory_space<vmem>>, vector<64x1xf32>
    %c0_3 = arith.constant 0 : index
    %c0_4 = arith.constant 0 : index
    %2 = vector.load %arg4[%c0_3, %c0_4] : memref<2x64xf32, #tpu.memory_space<vmem>>, vector<2x64xf32>
    %c0_5 = arith.constant 0 : index
    %c0_6 = arith.constant 0 : index
    %3 = vector.load %arg5[%c0_5, %c0_6] : memref<2x1xf32, #tpu.memory_space<vmem>>, vector<2x1xf32>
    %c0_i32 = arith.constant 0 : i32
    %c256_i32 = arith.constant 256 : i32
    %4 = arith.muli %c0_i32, %c256_i32 : i32
    %5 = tpu.assume_multiple %4, 256 : i32
    %c0_7 = arith.constant 0 : index
    %6 = arith.index_cast %5 : i32 to index
    %7 = vector.load %arg1[%c0_7, %6] : memref<3x256xf32, #tpu.memory_space<vmem>>, vector<3x256xf32>
    %cst = arith.constant dense<0.000000e+00> : vector<64x256xf32>
    %8 = tpu.matmul %0, %7, %cst {dimension_numbers = #tpu.dot_dimension_numbers<[1], [0], [0], [1], [0, 0, 1, 1], [], []>, precision = #tpu.contract_precision<fp32>} : vector<64x3xf32>, vector<3x256xf32>, vector<64x256xf32> -> vector<64x256xf32>
    %9 = vector.broadcast %1 : vector<64x1xf32> to vector<64x256xf32>
    %10 = arith.addf %8, %9 : vector<64x256xf32>
    %cst_8 = arith.constant 0.000000e+00 : f32
    %11 = vector.broadcast %cst_8 : f32 to vector<64x256xf32>
    %12 = arith.maximumf %10, %11 : vector<64x256xf32>
    %cst_9 = arith.constant dense<0.000000e+00> : vector<2x256xf32>
    %13 = tpu.matmul %2, %12, %cst_9 {dimension_numbers = #tpu.dot_dimension_numbers<[1], [0], [0], [1], [0, 0, 1, 1], [], []>, precision = #tpu.contract_precision<fp32>} : vector<2x64xf32>, vector<64x256xf32>, vector<2x256xf32> -> vector<2x256xf32>
    %14 = vector.broadcast %3 : vector<2x1xf32> to vector<2x256xf32>
    %15 = arith.addf %13, %14 : vector<2x256xf32>
    %c0_10 = arith.constant 0 : index
    %16 = arith.index_cast %5 : i32 to index
    %17 = vector.load %arg6[%c0_10, %16] : memref<2x256xf32, #tpu.memory_space<vmem>>, vector<2x256xf32>
    tpu.vector_store %arg6[%c0_10, %16], %15 {strides = array<i32>} : memref<2x256xf32, #tpu.memory_space<vmem>>, vector<2x256xf32>,
    %c1_i32 = arith.constant 1 : i32
    return
  }
  func.func @transform_0(%arg0: i32) -> (i32, i32) {
    %c0_i32 = arith.constant 0 : i32
    %c0_i32_0 = arith.constant 0 : i32
    return %c0_i32, %arg0 : i32, i32
  }
  func.func @transform_1(%arg0: i32) -> (i32, i32) {
    %c0_i32 = arith.constant 0 : i32
    %c0_i32_0 = arith.constant 0 : i32
    %c0_i32_1 = arith.constant 0 : i32
    return %c0_i32, %c0_i32_0 : i32, i32
  }
  func.func @transform_2(%arg0: i32) -> (i32, i32) {
    %c0_i32 = arith.constant 0 : i32
    %c0_i32_0 = arith.constant 0 : i32
    %c0_i32_1 = arith.constant 0 : i32
    return %c0_i32, %c0_i32_0 : i32, i32
  }
  func.func @transform_3(%arg0: i32) -> (i32, i32) {
    %c0_i32 = arith.constant 0 : i32
    %c0_i32_0 = arith.constant 0 : i32
    %c0_i32_1 = arith.constant 0 : i32
    return %c0_i32, %c0_i32_0 : i32, i32
  }
  func.func @transform_4(%arg0: i32) -> (i32, i32) {
    %c0_i32 = arith.constant 0 : i32
    %c0_i32_0 = arith.constant 0 : i32
    %c0_i32_1 = arith.constant 0 : i32
    return %c0_i32, %c0_i32_0 : i32, i32
  }
  func.func @transform_5(%arg0: i32) -> (i32, i32) {
    %c0_i32 = arith.constant 0 : i32
    %c0_i32_0 = arith.constant 0 : i32
    return %c0_i32, %arg0 : i32, i32
  }
}

</mosaic_0001>

<llo_original>
// kernel: interpolator_forward.1
$region0: #{interpolator_forward.1}
  #allocation0 [shape = 'u32[]', space=smem, size = 0x4, offset = 0x4, fixed_abs, tag = 'smem constant byte address 0x4 - core index']
  #allocation1 [shape = 'u32[144,128]{1,0:T(1,128)}', space=vmem, size = 0x12000, scoped, tag = 'internal scratch']
  %s0 = inlined_call_operand.vmem [shape: f32[3,256], index: 0, kind: input, shape index: {}]
  %s1 = inlined_call_operand.vmem [shape: f32[64,3], index: 1, kind: input, shape index: {}]
  %s2 = inlined_call_operand.vmem [shape: f32[64,1], index: 2, kind: input, shape index: {}]
  %s3 = inlined_call_operand.vmem [shape: f32[2,64], index: 3, kind: input, shape index: {}]
  %s4 = inlined_call_operand.vmem [shape: f32[2,1], index: 4, kind: input, shape index: {}]
  %s5 = inlined_call_operand.vmem [shape: f32[2,256], index: 5, kind: output, shape index: {}]
  %s6 = sld [smem:[#allocation0]]
  $region30: #{interpolator_forward.1} parent=0
    _
  %s8 = ssub.s32 1, %s6
  %s9 = scalar_select 0, %s8, %s6
  // Predicated region
  $region2: #{interpolator_forward.1} parent=0 // pred_check
    _
  $region3: #{interpolator_forward.1} parent=0 // pred_check_branch
    %11 = sbr.rel (0) target = $region5
  $region4: #{interpolator_forward.1} parent=0 // pred_region
    _
  $region5: #{interpolator_forward.1} parent=0 // pred_fallthru
    _
  // Predicated region
  $region6: #{interpolator_forward.1} parent=0 // pred_check
    _
  $region7: #{interpolator_forward.1} parent=0 // pred_check_branch
    %13 = sbr.rel (0) target = $region9
  $region8: #{interpolator_forward.1} parent=0 // pred_region
    _
  $region9: #{interpolator_forward.1} parent=0 // pred_fallthru
    _
  // Predicated region
  $region10: #{interpolator_forward.1} parent=0 // pred_check
    _
  $region11: #{interpolator_forward.1} parent=0 // pred_check_branch
    %15 = sbr.rel (0) target = $region13
  $region12: #{interpolator_forward.1} parent=0 // pred_region
    _
  $region13: #{interpolator_forward.1} parent=0 // pred_fallthru
    _
  // Predicated region
  $region14: #{interpolator_forward.1} parent=0 // pred_check
    _
  $region15: #{interpolator_forward.1} parent=0 // pred_check_branch
    %17 = sbr.rel (0) target = $region17
  $region16: #{interpolator_forward.1} parent=0 // pred_region
    _
  $region17: #{interpolator_forward.1} parent=0 // pred_fallthru
    _
  // Predicated region
  $region18: #{interpolator_forward.1} parent=0 // pred_check
    _
  $region19: #{interpolator_forward.1} parent=0 // pred_check_branch
    %19 = sbr.rel (0) target = $region21
  $region20: #{interpolator_forward.1} parent=0 // pred_region
    _
  $region21: #{interpolator_forward.1} parent=0 // pred_fallthru
    _
  %v20 = vld [vmem:[%s1] sm:$0xff]
  %v21 = vld [vmem:[%s1 + $0x8] sm:$0xff]
  %v22 = vld [vmem:[%s1 + $0x10] sm:$0xff]
  %v23 = vld [vmem:[%s1 + $0x18] sm:$0xff]
  %v24 = vld [vmem:[%s1 + $0x20] sm:$0xff]
  %v25 = vld [vmem:[%s1 + $0x28] sm:$0xff]
  %v26 = vld [vmem:[%s1 + $0x30] sm:$0xff]
  %v27 = vld [vmem:[%s1 + $0x38] sm:$0xff]
  %v28 = vld [vmem:[%s2] sm:$0xff]
  %v29 = vld [vmem:[%s2 + $0x8] sm:$0xff]
  %v30 = vld [vmem:[%s2 + $0x10] sm:$0xff]
  %v31 = vld [vmem:[%s2 + $0x18] sm:$0xff]
  %v32 = vld [vmem:[%s2 + $0x20] sm:$0xff]
  %v33 = vld [vmem:[%s2 + $0x28] sm:$0xff]
  %v34 = vld [vmem:[%s2 + $0x30] sm:$0xff]
  %v35 = vld [vmem:[%s2 + $0x38] sm:$0xff]
  %v36 = vld [vmem:[%s3] sm:$0x3]
  %v37 = vld [vmem:[%s4] sm:$0x3]
  %v38 = vld [vmem:[%s0] sm:$0x77]
  %40 = vset.pattern.permute.xlu0 0
  %41 = vperm.xlu0 %40, %v28
  %v42 = vpop.permute.xlu0 %41
  %45 = vset.pattern.permute.xlu0 0
  %46 = vperm.xlu0 %45, %v29
  %v47 = vpop.permute.xlu0 %46
  %50 = vset.pattern.permute.xlu0 0
  %51 = vperm.xlu0 %50, %v30
  %v52 = vpop.permute.xlu0 %51
  %55 = vset.pattern.permute.xlu0 0
  %56 = vperm.xlu0 %55, %v31
  %v57 = vpop.permute.xlu0 %56
  %60 = vset.pattern.permute.xlu0 0
  %61 = vperm.xlu0 %60, %v32
  %v62 = vpop.permute.xlu0 %61
  %65 = vset.pattern.permute.xlu0 0
  %66 = vperm.xlu0 %65, %v33
  %v67 = vpop.permute.xlu0 %66
  %70 = vset.pattern.permute.xlu0 0
  %71 = vperm.xlu0 %70, %v34
  %v72 = vpop.permute.xlu0 %71
  %75 = vset.pattern.permute.xlu0 0
  %76 = vperm.xlu0 %75, %v35
  %v77 = vpop.permute.xlu0 %76
  %v80 = vcombine.high %v38, %v38
  %vm81 = vcmask 23552
  %v83 = vsel %vm81, %v20, 0
  %v86 = vsel %vm81, %v21, 0
  %v89 = vsel %vm81, %v22, 0
  %v92 = vsel %vm81, %v23, 0
  %v95 = vsel %vm81, %v24, 0
  %v98 = vsel %vm81, %v25, 0
  %v101 = vsel %vm81, %v26, 0
  %v104 = vsel %vm81, %v27, 0
  %vm106 = vcmask 1042432
  %v107 = vsel %vm106, %v38, 0
  %v109 = vsel %vm106, %v80, 0
  %v111 = vand.u32 %v109, 4294901760
  %112 = vmatprep.subr.mxu0 %v111
  %v113 = vand.u32 %v107, 4294901760
  %114 = vmatpush1.msra.mxu0 %v113
  %115 = vmatprep.subr.mxu0 0.0
  %116 = vmatpush1.msra.mxu0 0.0
  %117 = vmatprep.subr.mxu0 0.0
  %118 = vmatpush1.msra.mxu0 0.0
  %119 = vmatprep.subr.mxu0 0.0
  %120 = vmatpush1.msra.mxu0 0.0
  %121 = vmatprep.subr.mxu0 0.0
  %122 = vmatpush1.msra.mxu0 0.0
  %123 = vmatprep.subr.mxu0 0.0
  %124 = vmatpush1.msra.mxu0 0.0
  %125 = vmatprep.subr.mxu0 0.0
  %126 = vmatpush1.msra.mxu0 0.0
  %127 = vmatprep.subr.mxu0 0.0
  %128 = vmatpush1.msra.mxu0 0.0
  %129 = vmatprep.subr.mxu0 0.0
  %130 = vmatpush1.msra.mxu0 0.0
  %131 = vmatprep.subr.mxu0 0.0
  %132 = vmatpush1.msra.mxu0 0.0
  %133 = vmatprep.subr.mxu0 0.0
  %134 = vmatpush1.msra.mxu0 0.0
  %135 = vmatprep.subr.mxu0 0.0
  %136 = vmatpush1.msra.mxu0 0.0
  %137 = vmatprep.subr.mxu0 0.0
  %138 = vmatpush1.msra.mxu0 0.0
  %139 = vmatprep.subr.mxu0 0.0
  %140 = vmatpush1.msra.mxu0 0.0
  %141 = vmatprep.subr.mxu0 0.0
  %142 = vmatpush1.msra.mxu0 0.0
  %143 = vmatprep.subr.mxu0 0.0
  %144 = vmatpush1.msra.mxu0 0.0
  %145 = vmatprep.subr.mxu0 0.0
  %146 = vmatpush1.msra.mxu0 0.0
  %147 = vmatprep.subr.mxu0 0.0
  %148 = vmatpush1.msra.mxu0 0.0
  %149 = vmatprep.subr.mxu0 0.0
  %150 = vmatpush1.msra.mxu0 0.0
  %151 = vmatprep.subr.mxu0 0.0
  %152 = vmatpush1.msra.mxu0 0.0
  %153 = vmatprep.subr.mxu0 0.0
  %154 = vmatpush1.msra.mxu0 0.0
  %155 = vmatprep.subr.mxu0 0.0
  %156 = vmatpush1.msra.mxu0 0.0
  %157 = vmatprep.subr.mxu0 0.0
  %158 = vmatpush1.msra.mxu0 0.0
  %159 = vmatprep.subr.mxu0 0.0
  %160 = vmatpush1.msra.mxu0 0.0
  %161 = vmatprep.subr.mxu0 0.0
  %162 = vmatpush1.msra.mxu0 0.0
  %163 = vmatprep.subr.mxu0 0.0
  %164 = vmatpush1.msra.mxu0 0.0
  %165 = vmatprep.subr.mxu0 0.0
  %166 = vmatpush1.msra.mxu0 0.0
  %167 = vmatprep.subr.mxu0 0.0
  %168 = vmatpush1.msra.mxu0 0.0
  %169 = vmatprep.subr.mxu0 0.0
  %170 = vmatpush1.msra.mxu0 0.0
  %171 = vmatprep.subr.mxu0 0.0
  %172 = vmatpush1.msra.mxu0 0.0
  %173 = vmatprep.subr.mxu0 0.0
  %174 = vmatpush1.msra.mxu0 0.0
  %175 = vmatprep.subr.mxu0 0.0
  %176 = vmatpush1.msra.mxu0 0.0
  %177 = vmatprep.mubr.f32.mxu0 0.0
  %v178 = vand.u32 %v83, 4294901760
  %v179 = vsub.f32 %v83, %v178
  %v180 = vand.u32 %v179, 4294901760
  %v181 = vsub.f32 %v179, %v180
  %v182 = vand.u32 %v181, 4294901760
  %183 = vmatmul.mubr.f32.gmra.mrb[0].mxu0 %v182
  %v184 = vpop.f32.mrb[0].mxu0
  %v185 = vadd.f32 %v42, %v184
  %v186 = vpop.f32.mrb[0].mxu0
  %v187 = vadd.f32 %v42, %v186
  %188 = vmatprep.mubr.f32.mxu0 0.0
  %v189 = vand.u32 %v86, 4294901760
  %v190 = vsub.f32 %v86, %v189
  %v191 = vand.u32 %v190, 4294901760
  %v192 = vsub.f32 %v190, %v191
  %v193 = vand.u32 %v192, 4294901760
  %194 = vmatmul.mubr.f32.gmra.mrb[0].mxu0 %v193
  %v195 = vpop.f32.mrb[0].mxu0
  %v196 = vadd.f32 %v47, %v195
  %v197 = vpop.f32.mrb[0].mxu0
  %v198 = vadd.f32 %v47, %v197
  %199 = vmatprep.mubr.f32.mxu0 0.0
  %v200 = vand.u32 %v89, 4294901760
  %v201 = vsub.f32 %v89, %v200
  %v202 = vand.u32 %v201, 4294901760
  %v203 = vsub.f32 %v201, %v202
  %v204 = vand.u32 %v203, 4294901760
  %205 = vmatmul.mubr.f32.gmra.mrb[0].mxu0 %v204
  %v206 = vpop.f32.mrb[0].mxu0
  %v207 = vadd.f32 %v52, %v206
  %v208 = vpop.f32.mrb[0].mxu0
  %v209 = vadd.f32 %v52, %v208
  %210 = vmatprep.mubr.f32.mxu0 0.0
  %v211 = vand.u32 %v92, 4294901760
  %v212 = vsub.f32 %v92, %v211
  %v213 = vand.u32 %v212, 4294901760
  %v214 = vsub.f32 %v212, %v213
  %v215 = vand.u32 %v214, 4294901760
  %216 = vmatmul.mubr.f32.gmra.mrb[0].mxu0 %v215
  %v217 = vpop.f32.mrb[0].mxu0
  %v218 = vadd.f32 %v57, %v217
  %v219 = vpop.f32.mrb[0].mxu0
  %v220 = vadd.f32 %v57, %v219
  %221 = vmatprep.mubr.f32.mxu0 0.0
  %v222 = vand.u32 %v95, 4294901760
  %v223 = vsub.f32 %v95, %v222
  %v224 = vand.u32 %v223, 4294901760
  %v225 = vsub.f32 %v223, %v224
  %v226 = vand.u32 %v225, 4294901760
  %227 = vmatmul.mubr.f32.gmra.mrb[0].mxu0 %v226
  %v228 = vpop.f32.mrb[0].mxu0
  %v229 = vadd.f32 %v62, %v228
  %v230 = vpop.f32.mrb[0].mxu0
  %v231 = vadd.f32 %v62, %v230
  %232 = vmatprep.mubr.f32.mxu0 0.0
  %v233 = vand.u32 %v98, 4294901760
  %v234 = vsub.f32 %v98, %v233
  %v235 = vand.u32 %v234, 4294901760
  %v236 = vsub.f32 %v234, %v235
  %v237 = vand.u32 %v236, 4294901760
  %238 = vmatmul.mubr.f32.gmra.mrb[0].mxu0 %v237
  %v239 = vpop.f32.mrb[0].mxu0
  %v240 = vadd.f32 %v67, %v239
  %v241 = vpop.f32.mrb[0].mxu0
  %v242 = vadd.f32 %v67, %v241
  %243 = vmatprep.mubr.f32.mxu0 0.0
  %v244 = vand.u32 %v101, 4294901760
  %v245 = vsub.f32 %v101, %v244
  %v246 = vand.u32 %v245, 4294901760
  %v247 = vsub.f32 %v245, %v246
  %v248 = vand.u32 %v247, 4294901760
  %249 = vmatmul.mubr.f32.gmra.mrb[0].mxu0 %v248
  %v250 = vpop.f32.mrb[0].mxu0
  %v251 = vadd.f32 %v72, %v250
  %v252 = vpop.f32.mrb[0].mxu0
  %v253 = vadd.f32 %v72, %v252
  %254 = vmatprep.mubr.f32.mxu0 0.0
  %v255 = vand.u32 %v104, 4294901760
  %v256 = vsub.f32 %v104, %v255
  %v257 = vand.u32 %v256, 4294901760
  %v258 = vsub.f32 %v256, %v257
  %v259 = vand.u32 %v258, 4294901760
  %260 = vmatmul.mubr.f32.gmra.mrb[0].mxu0 %v259
  %v261 = vpop.f32.mrb[0].mxu0
  %v262 = vadd.f32 %v77, %v261
  %v263 = vpop.f32.mrb[0].mxu0
  %v264 = vadd.f32 %v77, %v263
  %265 = vdwg.mxu0
  %v266 = vand.u32 %v109, 4294901760
  %v267 = vsub.f32 %v109, %v266
  %v268 = vand.u32 %v267, 4294901760
  %v269 = vsub.f32 %v267, %v268
  %v270 = vand.u32 %v269, 4294901760
  %271 = vmatprep.subr.mxu0 %v270
  %v272 = vand.u32 %v107, 4294901760
  %v273 = vsub.f32 %v107, %v272
  %v274 = vand.u32 %v273, 4294901760
  %v275 = vsub.f32 %v273, %v274
  %v276 = vand.u32 %v275, 4294901760
  %277 = vmatpush1.msra.mxu0 %v276
  %278 = vmatprep.subr.mxu0 0.0
  %279 = vmatpush1.msra.mxu0 0.0
  %280 = vmatprep.subr.mxu0 0.0
  %281 = vmatpush1.msra.mxu0 0.0
  %282 = vmatprep.subr.mxu0 0.0
  %283 = vmatpush1.msra.mxu0 0.0
  %284 = vmatprep.subr.mxu0 0.0
  %285 = vmatpush1.msra.mxu0 0.0
  %286 = vmatprep.subr.mxu0 0.0
  %287 = vmatpush1.msra.mxu0 0.0
  %288 = vmatprep.subr.mxu0 0.0
  %289 = vmatpush1.msra.mxu0 0.0
  %290 = vmatprep.subr.mxu0 0.0
  %291 = vmatpush1.msra.mxu0 0.0
  %292 = vmatprep.subr.mxu0 0.0
  %293 = vmatpush1.msra.mxu0 0.0
  %294 = vmatprep.subr.mxu0 0.0
  %295 = vmatpush1.msra.mxu0 0.0
  %296 = vmatprep.subr.mxu0 0.0
  %297 = vmatpush1.msra.mxu0 0.0
  %298 = vmatprep.subr.mxu0 0.0
  %299 = vmatpush1.msra.mxu0 0.0
  %300 = vmatprep.subr.mxu0 0.0
  %301 = vmatpush1.msra.mxu0 0.0
  %302 = vmatprep.subr.mxu0 0.0
  %303 = vmatpush1.msra.mxu0 0.0
  %304 = vmatprep.subr.mxu0 0.0
  %305 = vmatpush1.msra.mxu0 0.0
  %306 = vmatprep.subr.mxu0 0.0
  %307 = vmatpush1.msra.mxu0 0.0
  %308 = vmatprep.subr.mxu0 0.0
  %309 = vmatpush1.msra.mxu0 0.0
  %310 = vmatprep.subr.mxu0 0.0
  %311 = vmatpush1.msra.mxu0 0.0
  %312 = vmatprep.subr.mxu0 0.0
  %313 = vmatpush1.msra.mxu0 0.0
  %314 = vmatprep.subr.mxu0 0.0
  %315 = vmatpush1.msra.mxu0 0.0
  %316 = vmatprep.subr.mxu0 0.0
  %317 = vmatpush1.msra.mxu0 0.0
  %318 = vmatprep.subr.mxu0 0.0
  %319 = vmatpush1.msra.mxu0 0.0
  %320 = vmatprep.subr.mxu0 0.0
  %321 = vmatpush1.msra.mxu0 0.0
  %322 = vmatprep.subr.mxu0 0.0
  %323 = vmatpush1.msra.mxu0 0.0
  %324 = vmatprep.subr.mxu0 0.0
  %325 = vmatpush1.msra.mxu0 0.0
  %326 = vmatprep.subr.mxu0 0.0
  %327 = vmatpush1.msra.mxu0 0.0
  %328 = vmatprep.subr.mxu0 0.0
  %329 = vmatpush1.msra.mxu0 0.0
  %330 = vmatprep.subr.mxu0 0.0
  %331 = vmatpush1.msra.mxu0 0.0
  %332 = vmatprep.subr.mxu0 0.0
  %333 = vmatpush1.msra.mxu0 0.0
  %334 = vmatprep.subr.mxu0 0.0
  %335 = vmatpush1.msra.mxu0 0.0
  %336 = vmatprep.subr.mxu0 0.0
  %337 = vmatpush1.msra.mxu0 0.0
  %338 = vmatprep.subr.mxu0 0.0
  %339 = vmatpush1.msra.mxu0 0.0
  %340 = vmatprep.mubr.f32.mxu0 0.0
  %v341 = vand.u32 %v83, 4294901760
  %342 = vmatmul.mubr.f32.gmra.mrb[0].mxu0 %v341
  %v343 = vpop.f32.mrb[0].mxu0
  %v344 = vadd.f32 %v185, %v343
  %v345 = vpop.f32.mrb[0].mxu0
  %v346 = vadd.f32 %v187, %v345
  %347 = vmatprep.mubr.f32.mxu0 0.0
  %v348 = vand.u32 %v86, 4294901760
  %349 = vmatmul.mubr.f32.gmra.mrb[0].mxu0 %v348
  %v350 = vpop.f32.mrb[0].mxu0
  %v351 = vadd.f32 %v196, %v350
  %v352 = vpop.f32.mrb[0].mxu0
  %v353 = vadd.f32 %v198, %v352
  %354 = vmatprep.mubr.f32.mxu0 0.0
  %v355 = vand.u32 %v89, 4294901760
  %356 = vmatmul.mubr.f32.gmra.mrb[0].mxu0 %v355
  %v357 = vpop.f32.mrb[0].mxu0
  %v358 = vadd.f32 %v207, %v357
  %v359 = vpop.f32.mrb[0].mxu0
  %v360 = vadd.f32 %v209, %v359
  %361 = vmatprep.mubr.f32.mxu0 0.0
  %v362 = vand.u32 %v92, 4294901760
  %363 = vmatmul.mubr.f32.gmra.mrb[0].mxu0 %v362
  %v364 = vpop.f32.mrb[0].mxu0
  %v365 = vadd.f32 %v218, %v364
  %v366 = vpop.f32.mrb[0].mxu0
  %v367 = vadd.f32 %v220, %v366
  %368 = vmatprep.mubr.f32.mxu0 0.0
  %v369 = vand.u32 %v95, 4294901760
  %370 = vmatmul.mubr.f32.gmra.mrb[0].mxu0 %v369
  %v371 = vpop.f32.mrb[0].mxu0
  %v372 = vadd.f32 %v229, %v371
  %v373 = vpop.f32.mrb[0].mxu0
  %v374 = vadd.f32 %v231, %v373
  %375 = vmatprep.mubr.f32.mxu0 0.0
  %v376 = vand.u32 %v98, 4294901760
  %377 = vmatmul.mubr.f32.gmra.mrb[0].mxu0 %v376
  %v378 = vpop.f32.mrb[0].mxu0
  %v379 = vadd.f32 %v240, %v378
  %v380 = vpop.f32.mrb[0].mxu0
  %v381 = vadd.f32 %v242, %v380
  %382 = vmatprep.mubr.f32.mxu0 0.0
  %v383 = vand.u32 %v101, 4294901760
  %384 = vmatmul.mubr.f32.gmra.mrb[0].mxu0 %v383
  %v385 = vpop.f32.mrb[0].mxu0
  %v386 = vadd.f32 %v251, %v385
  %v387 = vpop.f32.mrb[0].mxu0
  %v388 = vadd.f32 %v253, %v387
  %389 = vmatprep.mubr.f32.mxu0 0.0
  %v390 = vand.u32 %v104, 4294901760
  %391 = vmatmul.mubr.f32.gmra.mrb[0].mxu0 %v390
  %v392 = vpop.f32.mrb[0].mxu0
  %v393 = vadd.f32 %v262, %v392
  %v394 = vpop.f32.mrb[0].mxu0
  %v395 = vadd.f32 %v264, %v394
  %396 = vdwg.mxu0
  %v397 = vand.u32 %v109, 4294901760
  %v398 = vsub.f32 %v109, %v397
  %399 = vmatprep.subr.mxu0 %v398
  %v400 = vand.u32 %v107, 4294901760
  %v401 = vsub.f32 %v107, %v400
  %402 = vmatpush1.msra.mxu0 %v401
  %403 = vmatprep.subr.mxu0 0.0
  %404 = vmatpush1.msra.mxu0 0.0
  %405 = vmatprep.subr.mxu0 0.0
  %406 = vmatpush1.msra.mxu0 0.0
  %407 = vmatprep.subr.mxu0 0.0
  %408 = vmatpush1.msra.mxu0 0.0
  %409 = vmatprep.subr.mxu0 0.0
  %410 = vmatpush1.msra.mxu0 0.0
  %411 = vmatprep.subr.mxu0 0.0
  %412 = vmatpush1.msra.mxu0 0.0
  %413 = vmatprep.subr.mxu0 0.0
  %414 = vmatpush1.msra.mxu0 0.0
  %415 = vmatprep.subr.mxu0 0.0
  %416 = vmatpush1.msra.mxu0 0.0
  %417 = vmatprep.subr.mxu0 0.0
  %418 = vmatpush1.msra.mxu0 0.0
  %419 = vmatprep.subr.mxu0 0.0
  %420 = vmatpush1.msra.mxu0 0.0
  %421 = vmatprep.subr.mxu0 0.0
  %422 = vmatpush1.msra.mxu0 0.0
  %423 = vmatprep.subr.mxu0 0.0
  %424 = vmatpush1.msra.mxu0 0.0
  %425 = vmatprep.subr.mxu0 0.0
  %426 = vmatpush1.msra.mxu0 0.0
  %427 = vmatprep.subr.mxu0 0.0
  %428 = vmatpush1.msra.mxu0 0.0
  %429 = vmatprep.subr.mxu0 0.0
  %430 = vmatpush1.msra.mxu0 0.0
  %431 = vmatprep.subr.mxu0 0.0
  %432 = vmatpush1.msra.mxu0 0.0
  %433 = vmatprep.subr.mxu0 0.0
  %434 = vmatpush1.msra.mxu0 0.0
  %435 = vmatprep.subr.mxu0 0.0
  %436 = vmatpush1.msra.mxu0 0.0
  %437 = vmatprep.subr.mxu0 0.0
  %438 = vmatpush1.msra.mxu0 0.0
  %439 = vmatprep.subr.mxu0 0.0
  %440 = vmatpush1.msra.mxu0 0.0
  %441 = vmatprep.subr.mxu0 0.0
  %442 = vmatpush1.msra.mxu0 0.0
  %443 = vmatprep.subr.mxu0 0.0
  %444 = vmatpush1.msra.mxu0 0.0
  %445 = vmatprep.subr.mxu0 0.0
  %446 = vmatpush1.msra.mxu0 0.0
  %447 = vmatprep.subr.mxu0 0.0
  %448 = vmatpush1.msra.mxu0 0.0
  %449 = vmatprep.subr.mxu0 0.0
  %450 = vmatpush1.msra.mxu0 0.0
  %451 = vmatprep.subr.mxu0 0.0
  %452 = vmatpush1.msra.mxu0 0.0
  %453 = vmatprep.subr.mxu0 0.0
  %454 = vmatpush1.msra.mxu0 0.0
  %455 = vmatprep.subr.mxu0 0.0
  %456 = vmatpush1.msra.mxu0 0.0
  %457 = vmatprep.subr.mxu0 0.0
  %458 = vmatpush1.msra.mxu0 0.0
  %459 = vmatprep.subr.mxu0 0.0
  %460 = vmatpush1.msra.mxu0 0.0
  %461 = vmatprep.subr.mxu0 0.0
  %462 = vmatpush1.msra.mxu0 0.0
  %463 = vmatprep.subr.mxu0 0.0
  %464 = vmatpush1.msra.mxu0 0.0
  %465 = vmatprep.mubr.f32.mxu0 0.0
  %v466 = vand.u32 %v83, 4294901760
  %v467 = vsub.f32 %v83, %v466
  %468 = vmatmul.mubr.f32.gmra.mrb[0].mxu0 %v467
  %v469 = vpop.f32.mrb[0].mxu0
  %v470 = vadd.f32 %v344, %v469
  %v471 = vpop.f32.mrb[0].mxu0
  %v472 = vadd.f32 %v346, %v471
  %473 = vmatprep.mubr.f32.mxu0 0.0
  %v474 = vand.u32 %v86, 4294901760
  %v475 = vsub.f32 %v86, %v474
  %476 = vmatmul.mubr.f32.gmra.mrb[0].mxu0 %v475
  %v477 = vpop.f32.mrb[0].mxu0
  %v478 = vadd.f32 %v351, %v477
  %v479 = vpop.f32.mrb[0].mxu0
  %v480 = vadd.f32 %v353, %v479
  %481 = vmatprep.mubr.f32.mxu0 0.0
  %v482 = vand.u32 %v89, 4294901760
  %v483 = vsub.f32 %v89, %v482
  %484 = vmatmul.mubr.f32.gmra.mrb[0].mxu0 %v483
  %v485 = vpop.f32.mrb[0].mxu0
  %v486 = vadd.f32 %v358, %v485
  %v487 = vpop.f32.mrb[0].mxu0
  %v488 = vadd.f32 %v360, %v487
  %489 = vmatprep.mubr.f32.mxu0 0.0
  %v490 = vand.u32 %v92, 4294901760
  %v491 = vsub.f32 %v92, %v490
  %492 = vmatmul.mubr.f32.gmra.mrb[0].mxu0 %v491
  %v493 = vpop.f32.mrb[0].mxu0
  %v494 = vadd.f32 %v365, %v493
  %v495 = vpop.f32.mrb[0].mxu0
  %v496 = vadd.f32 %v367, %v495
  %497 = vmatprep.mubr.f32.mxu0 0.0
  %v498 = vand.u32 %v95, 4294901760
  %v499 = vsub.f32 %v95, %v498
  %500 = vmatmul.mubr.f32.gmra.mrb[0].mxu0 %v499
  %v501 = vpop.f32.mrb[0].mxu0
  %v502 = vadd.f32 %v372, %v501
  %v503 = vpop.f32.mrb[0].mxu0
  %v504 = vadd.f32 %v374, %v503
  %505 = vmatprep.mubr.f32.mxu0 0.0
  %v506 = vand.u32 %v98, 4294901760
  %v507 = vsub.f32 %v98, %v506
  %508 = vmatmul.mubr.f32.gmra.mrb[0].mxu0 %v507
  %v509 = vpop.f32.mrb[0].mxu0
  %v510 = vadd.f32 %v379, %v509
  %v511 = vpop.f32.mrb[0].mxu0
  %v512 = vadd.f32 %v381, %v511
  %513 = vmatprep.mubr.f32.mxu0 0.0
  %v514 = vand.u32 %v101, 4294901760
  %v515 = vsub.f32 %v101, %v514
  %516 = vmatmul.mubr.f32.gmra.mrb[0].mxu0 %v515
  %v517 = vpop.f32.mrb[0].mxu0
  %v518 = vadd.f32 %v386, %v517
  %v519 = vpop.f32.mrb[0].mxu0
  %v520 = vadd.f32 %v388, %v519
  %521 = vmatprep.mubr.f32.mxu0 0.0
  %v522 = vand.u32 %v104, 4294901760
  %v523 = vsub.f32 %v104, %v522
  %524 = vmatmul.mubr.f32.gmra.mrb[0].mxu0 %v523
  %v525 = vpop.f32.mrb[0].mxu0
  %v526 = vadd.f32 %v393, %v525
  %v527 = vpop.f32.mrb[0].mxu0
  %v528 = vadd.f32 %v395, %v527
  %529 = vdwg.mxu0
  %v530 = vand.u32 %v109, 4294901760
  %531 = vmatprep.subr.mxu0 %v530
  %v532 = vand.u32 %v107, 4294901760
  %533 = vmatpush1.msra.mxu0 %v532
  %534 = vmatprep.subr.mxu0 0.0
  %535 = vmatpush1.msra.mxu0 0.0
  %536 = vmatprep.subr.mxu0 0.0
  %537 = vmatpush1.msra.mxu0 0.0
  %538 = vmatprep.subr.mxu0 0.0
  %539 = vmatpush1.msra.mxu0 0.0
  %540 = vmatprep.subr.mxu0 0.0
  %541 = vmatpush1.msra.mxu0 0.0
  %542 = vmatprep.subr.mxu0 0.0
  %543 = vmatpush1.msra.mxu0 0.0
  %544 = vmatprep.subr.mxu0 0.0
  %545 = vmatpush1.msra.mxu0 0.0
  %546 = vmatprep.subr.mxu0 0.0
  %547 = vmatpush1.msra.mxu0 0.0
  %548 = vmatprep.subr.mxu0 0.0
  %549 = vmatpush1.msra.mxu0 0.0
  %550 = vmatprep.subr.mxu0 0.0
  %551 = vmatpush1.msra.mxu0 0.0
  %552 = vmatprep.subr.mxu0 0.0
  %553 = vmatpush1.msra.mxu0 0.0
  %554 = vmatprep.subr.mxu0 0.0
  %555 = vmatpush1.msra.mxu0 0.0
  %556 = vmatprep.subr.mxu0 0.0
  %557 = vmatpush1.msra.mxu0 0.0
  %558 = vmatprep.subr.mxu0 0.0
  %559 = vmatpush1.msra.mxu0 0.0
  %560 = vmatprep.subr.mxu0 0.0
  %561 = vmatpush1.msra.mxu0 0.0
  %562 = vmatprep.subr.mxu0 0.0
  %563 = vmatpush1.msra.mxu0 0.0
  %564 = vmatprep.subr.mxu0 0.0
  %565 = vmatpush1.msra.mxu0 0.0
  %566 = vmatprep.subr.mxu0 0.0
  %567 = vmatpush1.msra.mxu0 0.0
  %568 = vmatprep.subr.mxu0 0.0
  %569 = vmatpush1.msra.mxu0 0.0
  %570 = vmatprep.subr.mxu0 0.0
  %571 = vmatpush1.msra.mxu0 0.0
  %572 = vmatprep.subr.mxu0 0.0
  %573 = vmatpush1.msra.mxu0 0.0
  %574 = vmatprep.subr.mxu0 0.0
  %575 = vmatpush1.msra.mxu0 0.0
  %576 = vmatprep.subr.mxu0 0.0
  %577 = vmatpush1.msra.mxu0 0.0
  %578 = vmatprep.subr.mxu0 0.0
  %579 = vmatpush1.msra.mxu0 0.0
  %580 = vmatprep.subr.mxu0 0.0
  %581 = vmatpush1.msra.mxu0 0.0
  %582 = vmatprep.subr.mxu0 0.0
  %583 = vmatpush1.msra.mxu0 0.0
  %584 = vmatprep.subr.mxu0 0.0
  %585 = vmatpush1.msra.mxu0 0.0
  %586 = vmatprep.subr.mxu0 0.0
  %587 = vmatpush1.msra.mxu0 0.0
  %588 = vmatprep.subr.mxu0 0.0
  %589 = vmatpush1.msra.mxu0 0.0
  %590 = vmatprep.subr.mxu0 0.0
  %591 = vmatpush1.msra.mxu0 0.0
  %592 = vmatprep.subr.mxu0 0.0
  %593 = vmatpush1.msra.mxu0 0.0
  %594 = vmatprep.subr.mxu0 0.0
  %595 = vmatpush1.msra.mxu0 0.0
  %596 = vmatprep.mubr.f32.mxu0 0.0
  %v597 = vand.u32 %v83, 4294901760
  %v598 = vsub.f32 %v83, %v597
  %v599 = vand.u32 %v598, 4294901760
  %600 = vmatmul.mubr.f32.gmra.mrb[0].mxu0 %v599
  %v601 = vpop.f32.mrb[0].mxu0
  %v602 = vadd.f32 %v470, %v601
  %v603 = vpop.f32.mrb[0].mxu0
  %v604 = vadd.f32 %v472, %v603
  %605 = vmatprep.mubr.f32.mxu0 0.0
  %v606 = vand.u32 %v86, 4294901760
  %v607 = vsub.f32 %v86, %v606
  %v608 = vand.u32 %v607, 4294901760
  %609 = vmatmul.mubr.f32.gmra.mrb[0].mxu0 %v608
  %v610 = vpop.f32.mrb[0].mxu0
  %v611 = vadd.f32 %v478, %v610
  %v612 = vpop.f32.mrb[0].mxu0
  %v613 = vadd.f32 %v480, %v612
  %614 = vmatprep.mubr.f32.mxu0 0.0
  %v615 = vand.u32 %v89, 4294901760
  %v616 = vsub.f32 %v89, %v615
  %v617 = vand.u32 %v616, 4294901760
  %618 = vmatmul.mubr.f32.gmra.mrb[0].mxu0 %v617
  %v619 = vpop.f32.mrb[0].mxu0
  %v620 = vadd.f32 %v486, %v619
  %v621 = vpop.f32.mrb[0].mxu0
  %v622 = vadd.f32 %v488, %v621
  %623 = vmatprep.mubr.f32.mxu0 0.0
  %v624 = vand.u32 %v92, 4294901760
  %v625 = vsub.f32 %v92, %v624
  %v626 = vand.u32 %v625, 4294901760
  %627 = vmatmul.mubr.f32.gmra.mrb[0].mxu0 %v626
  %v628 = vpop.f32.mrb[0].mxu0
  %v629 = vadd.f32 %v494, %v628
  %v630 = vpop.f32.mrb[0].mxu0
  %v631 = vadd.f32 %v496, %v630
  %632 = vmatprep.mubr.f32.mxu0 0.0
  %v633 = vand.u32 %v95, 4294901760
  %v634 = vsub.f32 %v95, %v633
  %v635 = vand.u32 %v634, 4294901760
  %636 = vmatmul.mubr.f32.gmra.mrb[0].mxu0 %v635
  %v637 = vpop.f32.mrb[0].mxu0
  %v638 = vadd.f32 %v502, %v637
  %v639 = vpop.f32.mrb[0].mxu0
  %v640 = vadd.f32 %v504, %v639
  %641 = vmatprep.mubr.f32.mxu0 0.0
  %v642 = vand.u32 %v98, 4294901760
  %v643 = vsub.f32 %v98, %v642
  %v644 = vand.u32 %v643, 4294901760
  %645 = vmatmul.mubr.f32.gmra.mrb[0].mxu0 %v644
  %v646 = vpop.f32.mrb[0].mxu0
  %v647 = vadd.f32 %v510, %v646
  %v648 = vpop.f32.mrb[0].mxu0
  %v649 = vadd.f32 %v512, %v648
  %650 = vmatprep.mubr.f32.mxu0 0.0
  %v651 = vand.u32 %v101, 4294901760
  %v652 = vsub.f32 %v101, %v651
  %v653 = vand.u32 %v652, 4294901760
  %654 = vmatmul.mubr.f32.gmra.mrb[0].mxu0 %v653
  %v655 = vpop.f32.mrb[0].mxu0
  %v656 = vadd.f32 %v518, %v655
  %v657 = vpop.f32.mrb[0].mxu0
  %v658 = vadd.f32 %v520, %v657
  %659 = vmatprep.mubr.f32.mxu0 0.0
  %v660 = vand.u32 %v104, 4294901760
  %v661 = vsub.f32 %v104, %v660
  %v662 = vand.u32 %v661, 4294901760
  %663 = vmatmul.mubr.f32.gmra.mrb[0].mxu0 %v662
  %v664 = vpop.f32.mrb[0].mxu0
  %v665 = vadd.f32 %v526, %v664
  %v666 = vpop.f32.mrb[0].mxu0
  %v667 = vadd.f32 %v528, %v666
  %668 = vdwg.mxu0
  %v669 = vand.u32 %v109, 4294901760
  %v670 = vsub.f32 %v109, %v669
  %v671 = vand.u32 %v670, 4294901760
  %672 = vmatprep.subr.mxu0 %v671
  %v673 = vand.u32 %v107, 4294901760
  %v674 = vsub.f32 %v107, %v673
  %v675 = vand.u32 %v674, 4294901760
  %676 = vmatpush1.msra.mxu0 %v675
  %677 = vmatprep.subr.mxu0 0.0
  %678 = vmatpush1.msra.mxu0 0.0
  %679 = vmatprep.subr.mxu0 0.0
  %680 = vmatpush1.msra.mxu0 0.0
  %681 = vmatprep.subr.mxu0 0.0
  %682 = vmatpush1.msra.mxu0 0.0
  %683 = vmatprep.subr.mxu0 0.0
  %684 = vmatpush1.msra.mxu0 0.0
  %685 = vmatprep.subr.mxu0 0.0
  %686 = vmatpush1.msra.mxu0 0.0
  %687 = vmatprep.subr.mxu0 0.0
  %688 = vmatpush1.msra.mxu0 0.0
  %689 = vmatprep.subr.mxu0 0.0
  %690 = vmatpush1.msra.mxu0 0.0
  %691 = vmatprep.subr.mxu0 0.0
  %692 = vmatpush1.msra.mxu0 0.0
  %693 = vmatprep.subr.mxu0 0.0
  %694 = vmatpush1.msra.mxu0 0.0
  %695 = vmatprep.subr.mxu0 0.0
  %696 = vmatpush1.msra.mxu0 0.0
  %697 = vmatprep.subr.mxu0 0.0
  %698 = vmatpush1.msra.mxu0 0.0
  %699 = vmatprep.subr.mxu0 0.0
  %700 = vmatpush1.msra.mxu0 0.0
  %701 = vmatprep.subr.mxu0 0.0
  %702 = vmatpush1.msra.mxu0 0.0
  %703 = vmatprep.subr.mxu0 0.0
  %704 = vmatpush1.msra.mxu0 0.0
  %705 = vmatprep.subr.mxu0 0.0
  %706 = vmatpush1.msra.mxu0 0.0
  %707 = vmatprep.subr.mxu0 0.0
  %708 = vmatpush1.msra.mxu0 0.0
  %709 = vmatprep.subr.mxu0 0.0
  %710 = vmatpush1.msra.mxu0 0.0
  %711 = vmatprep.subr.mxu0 0.0
  %712 = vmatpush1.msra.mxu0 0.0
  %713 = vmatprep.subr.mxu0 0.0
  %714 = vmatpush1.msra.mxu0 0.0
  %715 = vmatprep.subr.mxu0 0.0
  %716 = vmatpush1.msra.mxu0 0.0
  %717 = vmatprep.subr.mxu0 0.0
  %718 = vmatpush1.msra.mxu0 0.0
  %719 = vmatprep.subr.mxu0 0.0
  %720 = vmatpush1.msra.mxu0 0.0
  %721 = vmatprep.subr.mxu0 0.0
  %722 = vmatpush1.msra.mxu0 0.0
  %723 = vmatprep.subr.mxu0 0.0
  %724 = vmatpush1.msra.mxu0 0.0
  %725 = vmatprep.subr.mxu0 0.0
  %726 = vmatpush1.msra.mxu0 0.0
  %727 = vmatprep.subr.mxu0 0.0
  %728 = vmatpush1.msra.mxu0 0.0
  %729 = vmatprep.subr.mxu0 0.0
  %730 = vmatpush1.msra.mxu0 0.0
  %731 = vmatprep.subr.mxu0 0.0
  %732 = vmatpush1.msra.mxu0 0.0
  %733 = vmatprep.subr.mxu0 0.0
  %734 = vmatpush1.msra.mxu0 0.0
  %735 = vmatprep.subr.mxu0 0.0
  %736 = vmatpush1.msra.mxu0 0.0
  %737 = vmatprep.subr.mxu0 0.0
  %738 = vmatpush1.msra.mxu0 0.0
  %739 = vmatprep.mubr.f32.mxu0 0.0
  %v740 = vand.u32 %v83, 4294901760
  %741 = vmatmul.mubr.f32.gmra.mrb[0].mxu0 %v740
  %v742 = vpop.f32.mrb[0].mxu0
  %v743 = vadd.f32 %v602, %v742
  %v744 = vpop.f32.mrb[0].mxu0
  %v745 = vadd.f32 %v604, %v744
  %746 = vmatprep.mubr.f32.mxu0 0.0
  %v747 = vand.u32 %v86, 4294901760
  %748 = vmatmul.mubr.f32.gmra.mrb[0].mxu0 %v747
  %v749 = vpop.f32.mrb[0].mxu0
  %v750 = vadd.f32 %v611, %v749
  %v751 = vpop.f32.mrb[0].mxu0
  %v752 = vadd.f32 %v613, %v751
  %753 = vmatprep.mubr.f32.mxu0 0.0
  %v754 = vand.u32 %v89, 4294901760
  %755 = vmatmul.mubr.f32.gmra.mrb[0].mxu0 %v754
  %v756 = vpop.f32.mrb[0].mxu0
  %v757 = vadd.f32 %v620, %v756
  %v758 = vpop.f32.mrb[0].mxu0
  %v759 = vadd.f32 %v622, %v758
  %760 = vmatprep.mubr.f32.mxu0 0.0
  %v761 = vand.u32 %v92, 4294901760
  %762 = vmatmul.mubr.f32.gmra.mrb[0].mxu0 %v761
  %v763 = vpop.f32.mrb[0].mxu0
  %v764 = vadd.f32 %v629, %v763
  %v765 = vpop.f32.mrb[0].mxu0
  %v766 = vadd.f32 %v631, %v765
  %767 = vmatprep.mubr.f32.mxu0 0.0
  %v768 = vand.u32 %v95, 4294901760
  %769 = vmatmul.mubr.f32.gmra.mrb[0].mxu0 %v768
  %v770 = vpop.f32.mrb[0].mxu0
  %v771 = vadd.f32 %v638, %v770
  %v772 = vpop.f32.mrb[0].mxu0
  %v773 = vadd.f32 %v640, %v772
  %774 = vmatprep.mubr.f32.mxu0 0.0
  %v775 = vand.u32 %v98, 4294901760
  %776 = vmatmul.mubr.f32.gmra.mrb[0].mxu0 %v775
  %v777 = vpop.f32.mrb[0].mxu0
  %v778 = vadd.f32 %v647, %v777
  %v779 = vpop.f32.mrb[0].mxu0
  %v780 = vadd.f32 %v649, %v779
  %781 = vmatprep.mubr.f32.mxu0 0.0
  %v782 = vand.u32 %v101, 4294901760
  %783 = vmatmul.mubr.f32.gmra.mrb[0].mxu0 %v782
  %v784 = vpop.f32.mrb[0].mxu0
  %v785 = vadd.f32 %v656, %v784
  %v786 = vpop.f32.mrb[0].mxu0
  %v787 = vadd.f32 %v658, %v786
  %788 = vmatprep.mubr.f32.mxu0 0.0
  %v789 = vand.u32 %v104, 4294901760
  %790 = vmatmul.mubr.f32.gmra.mrb[0].mxu0 %v789
  %v791 = vpop.f32.mrb[0].mxu0
  %v792 = vadd.f32 %v665, %v791
  %v793 = vpop.f32.mrb[0].mxu0
  %v794 = vadd.f32 %v667, %v793
  %795 = vdwg.mxu0
  %v796 = vand.u32 %v109, 4294901760
  %797 = vmatprep.subr.mxu0 %v796
  %v798 = vand.u32 %v107, 4294901760
  %799 = vmatpush1.msra.mxu0 %v798
  %800 = vmatprep.subr.mxu0 0.0
  %801 = vmatpush1.msra.mxu0 0.0
  %802 = vmatprep.subr.mxu0 0.0
  %803 = vmatpush1.msra.mxu0 0.0
  %804 = vmatprep.subr.mxu0 0.0
  %805 = vmatpush1.msra.mxu0 0.0
  %806 = vmatprep.subr.mxu0 0.0
  %807 = vmatpush1.msra.mxu0 0.0
  %808 = vmatprep.subr.mxu0 0.0
  %809 = vmatpush1.msra.mxu0 0.0
  %810 = vmatprep.subr.mxu0 0.0
  %811 = vmatpush1.msra.mxu0 0.0
  %812 = vmatprep.subr.mxu0 0.0
  %813 = vmatpush1.msra.mxu0 0.0
  %814 = vmatprep.subr.mxu0 0.0
  %815 = vmatpush1.msra.mxu0 0.0
  %816 = vmatprep.subr.mxu0 0.0
  %817 = vmatpush1.msra.mxu0 0.0
  %818 = vmatprep.subr.mxu0 0.0
  %819 = vmatpush1.msra.mxu0 0.0
  %820 = vmatprep.subr.mxu0 0.0
  %821 = vmatpush1.msra.mxu0 0.0
  %822 = vmatprep.subr.mxu0 0.0
  %823 = vmatpush1.msra.mxu0 0.0
  %824 = vmatprep.subr.mxu0 0.0
  %825 = vmatpush1.msra.mxu0 0.0
  %826 = vmatprep.subr.mxu0 0.0
  %827 = vmatpush1.msra.mxu0 0.0
  %828 = vmatprep.subr.mxu0 0.0
  %829 = vmatpush1.msra.mxu0 0.0
  %830 = vmatprep.subr.mxu0 0.0
  %831 = vmatpush1.msra.mxu0 0.0
  %832 = vmatprep.subr.mxu0 0.0
  %833 = vmatpush1.msra.mxu0 0.0
  %834 = vmatprep.subr.mxu0 0.0
  %835 = vmatpush1.msra.mxu0 0.0
  %836 = vmatprep.subr.mxu0 0.0
  %837 = vmatpush1.msra.mxu0 0.0
  %838 = vmatprep.subr.mxu0 0.0
  %839 = vmatpush1.msra.mxu0 0.0
  %840 = vmatprep.subr.mxu0 0.0
  %841 = vmatpush1.msra.mxu0 0.0
  %842 = vmatprep.subr.mxu0 0.0
  %843 = vmatpush1.msra.mxu0 0.0
  %844 = vmatprep.subr.mxu0 0.0
  %845 = vmatpush1.msra.mxu0 0.0
  %846 = vmatprep.subr.mxu0 0.0
  %847 = vmatpush1.msra.mxu0 0.0
  %848 = vmatprep.subr.mxu0 0.0
  %849 = vmatpush1.msra.mxu0 0.0
  %850 = vmatprep.subr.mxu0 0.0
  %851 = vmatpush1.msra.mxu0 0.0
  %852 = vmatprep.subr.mxu0 0.0
  %853 = vmatpush1.msra.mxu0 0.0
  %854 = vmatprep.subr.mxu0 0.0
  %855 = vmatpush1.msra.mxu0 0.0
  %856 = vmatprep.subr.mxu0 0.0
  %857 = vmatpush1.msra.mxu0 0.0
  %858 = vmatprep.subr.mxu0 0.0
  %859 = vmatpush1.msra.mxu0 0.0
  %860 = vmatprep.subr.mxu0 0.0
  %861 = vmatpush1.msra.mxu0 0.0
  %862 = vmatprep.mubr.f32.mxu0 0.0
  %v863 = vand.u32 %v83, 4294901760
  %864 = vmatmul.mubr.f32.gmra.mrb[0].mxu0 %v863
  %v865 = vpop.f32.mrb[0].mxu0
  %v866 = vadd.f32 %v743, %v865
  %v867 = vpop.f32.mrb[0].mxu0
  %v868 = vadd.f32 %v745, %v867
  %869 = vmatprep.mubr.f32.mxu0 0.0
  %v870 = vand.u32 %v86, 4294901760
  %871 = vmatmul.mubr.f32.gmra.mrb[0].mxu0 %v870
  %v872 = vpop.f32.mrb[0].mxu0
  %v873 = vadd.f32 %v750, %v872
  %v874 = vpop.f32.mrb[0].mxu0
  %v875 = vadd.f32 %v752, %v874
  %876 = vmatprep.mubr.f32.mxu0 0.0
  %v877 = vand.u32 %v89, 4294901760
  %878 = vmatmul.mubr.f32.gmra.mrb[0].mxu0 %v877
  %v879 = vpop.f32.mrb[0].mxu0
  %v880 = vadd.f32 %v757, %v879
  %v881 = vpop.f32.mrb[0].mxu0
  %v882 = vadd.f32 %v759, %v881
  %883 = vmatprep.mubr.f32.mxu0 0.0
  %v884 = vand.u32 %v92, 4294901760
  %885 = vmatmul.mubr.f32.gmra.mrb[0].mxu0 %v884
  %v886 = vpop.f32.mrb[0].mxu0
  %v887 = vadd.f32 %v764, %v886
  %v888 = vpop.f32.mrb[0].mxu0
  %v889 = vadd.f32 %v766, %v888
  %890 = vmatprep.mubr.f32.mxu0 0.0
  %v891 = vand.u32 %v95, 4294901760
  %892 = vmatmul.mubr.f32.gmra.mrb[0].mxu0 %v891
  %v893 = vpop.f32.mrb[0].mxu0
  %v894 = vadd.f32 %v771, %v893
  %v895 = vpop.f32.mrb[0].mxu0
  %v896 = vadd.f32 %v773, %v895
  %897 = vmatprep.mubr.f32.mxu0 0.0
  %v898 = vand.u32 %v98, 4294901760
  %899 = vmatmul.mubr.f32.gmra.mrb[0].mxu0 %v898
  %v900 = vpop.f32.mrb[0].mxu0
  %v901 = vadd.f32 %v778, %v900
  %v902 = vpop.f32.mrb[0].mxu0
  %v903 = vadd.f32 %v780, %v902
  %904 = vmatprep.mubr.f32.mxu0 0.0
  %v905 = vand.u32 %v101, 4294901760
  %906 = vmatmul.mubr.f32.gmra.mrb[0].mxu0 %v905
  %v907 = vpop.f32.mrb[0].mxu0
  %v908 = vadd.f32 %v785, %v907
  %v909 = vpop.f32.mrb[0].mxu0
  %v910 = vadd.f32 %v787, %v909
  %911 = vmatprep.mubr.f32.mxu0 0.0
  %v912 = vand.u32 %v104, 4294901760
  %913 = vmatmul.mubr.f32.gmra.mrb[0].mxu0 %v912
  %v914 = vpop.f32.mrb[0].mxu0
  %v915 = vadd.f32 %v792, %v914
  %v916 = vpop.f32.mrb[0].mxu0
  %v917 = vadd.f32 %v794, %v916
  %918 = vdwg.mxu0
  %v919 = vmax.f32 %v866, 0.0
  %v920 = vmax.f32 %v868, 0.0
  %v921 = vmax.f32 %v873, 0.0
  %v922 = vmax.f32 %v875, 0.0
  %v923 = vmax.f32 %v880, 0.0
  %v924 = vmax.f32 %v882, 0.0
  %v925 = vmax.f32 %v887, 0.0
  %v926 = vmax.f32 %v889, 0.0
  %v927 = vmax.f32 %v894, 0.0
  %v928 = vmax.f32 %v896, 0.0
  %v929 = vmax.f32 %v901, 0.0
  %v930 = vmax.f32 %v903, 0.0
  %v931 = vmax.f32 %v908, 0.0
  %v932 = vmax.f32 %v910, 0.0
  %v933 = vmax.f32 %v915, 0.0
  %v934 = vmax.f32 %v917, 0.0
  %936 = vset.pattern.permute.xlu0 0
  %937 = vperm.xlu0 %936, %v37
  %v938 = vpop.permute.xlu0 %937
  %vm940 = vcmask 523264
  %v942 = vsel %vm940, %v36, 0
  %v944 = vand.u32 %v920, 4294901760
  %945 = vmatprep.subr.mxu0 %v944
  %v946 = vand.u32 %v919, 4294901760
  %947 = vmatpush1.msra.mxu0 %v946
  %v948 = vand.u32 %v922, 4294901760
  %949 = vmatprep.subr.mxu0 %v948
  %v950 = vand.u32 %v921, 4294901760
  %951 = vmatpush1.msra.mxu0 %v950
  %v952 = vand.u32 %v924, 4294901760
  %953 = vmatprep.subr.mxu0 %v952
  %v954 = vand.u32 %v923, 4294901760
  %955 = vmatpush1.msra.mxu0 %v954
  %v956 = vand.u32 %v926, 4294901760
  %957 = vmatprep.subr.mxu0 %v956
  %v958 = vand.u32 %v925, 4294901760
  %959 = vmatpush1.msra.mxu0 %v958
  %v960 = vand.u32 %v928, 4294901760
  %961 = vmatprep.subr.mxu0 %v960
  %v962 = vand.u32 %v927, 4294901760
  %963 = vmatpush1.msra.mxu0 %v962
  %v964 = vand.u32 %v930, 4294901760
  %965 = vmatprep.subr.mxu0 %v964
  %v966 = vand.u32 %v929, 4294901760
  %967 = vmatpush1.msra.mxu0 %v966
  %v968 = vand.u32 %v932, 4294901760
  %969 = vmatprep.subr.mxu0 %v968
  %v970 = vand.u32 %v931, 4294901760
  %971 = vmatpush1.msra.mxu0 %v970
  %v972 = vand.u32 %v934, 4294901760
  %973 = vmatprep.subr.mxu0 %v972
  %v974 = vand.u32 %v933, 4294901760
  %975 = vmatpush1.msra.mxu0 %v974
  %976 = vmatprep.subr.mxu0 0.0
  %977 = vmatpush1.msra.mxu0 0.0
  %978 = vmatprep.subr.mxu0 0.0
  %979 = vmatpush1.msra.mxu0 0.0
  %980 = vmatprep.subr.mxu0 0.0
  %981 = vmatpush1.msra.mxu0 0.0
  %982 = vmatprep.subr.mxu0 0.0
  %983 = vmatpush1.msra.mxu0 0.0
  %984 = vmatprep.subr.mxu0 0.0
  %985 = vmatpush1.msra.mxu0 0.0
  %986 = vmatprep.subr.mxu0 0.0
  %987 = vmatpush1.msra.mxu0 0.0
  %988 = vmatprep.subr.mxu0 0.0
  %989 = vmatpush1.msra.mxu0 0.0
  %990 = vmatprep.subr.mxu0 0.0
  %991 = vmatpush1.msra.mxu0 0.0
  %992 = vmatprep.subr.mxu0 0.0
  %993 = vmatpush1.msra.mxu0 0.0
  %994 = vmatprep.subr.mxu0 0.0
  %995 = vmatpush1.msra.mxu0 0.0
  %996 = vmatprep.subr.mxu0 0.0
  %997 = vmatpush1.msra.mxu0 0.0
  %998 = vmatprep.subr.mxu0 0.0
  %999 = vmatpush1.msra.mxu0 0.0
  %1000 = vmatprep.subr.mxu0 0.0
  %1001 = vmatpush1.msra.mxu0 0.0
  %1002 = vmatprep.subr.mxu0 0.0
  %1003 = vmatpush1.msra.mxu0 0.0
  %1004 = vmatprep.subr.mxu0 0.0
  %1005 = vmatpush1.msra.mxu0 0.0
  %1006 = vmatprep.subr.mxu0 0.0
  %1007 = vmatpush1.msra.mxu0 0.0
  %1008 = vmatprep.subr.mxu0 0.0
  %1009 = vmatpush1.msra.mxu0 0.0
  %1010 = vmatprep.subr.mxu0 0.0
  %1011 = vmatpush1.msra.mxu0 0.0
  %1012 = vmatprep.subr.mxu0 0.0
  %1013 = vmatpush1.msra.mxu0 0.0
  %1014 = vmatprep.subr.mxu0 0.0
  %1015 = vmatpush1.msra.mxu0 0.0
  %1016 = vmatprep.subr.mxu0 0.0
  %1017 = vmatpush1.msra.mxu0 0.0
  %1018 = vmatprep.subr.mxu0 0.0
  %1019 = vmatpush1.msra.mxu0 0.0
  %1020 = vmatprep.subr.mxu0 0.0
  %1021 = vmatpush1.msra.mxu0 0.0
  %1022 = vmatprep.subr.mxu0 0.0
  %1023 = vmatpush1.msra.mxu0 0.0
  %1024 = vmatprep.mubr.f32.mxu0 0.0
  %v1025 = vand.u32 %v942, 4294901760
  %v1026 = vsub.f32 %v942, %v1025
  %v1027 = vand.u32 %v1026, 4294901760
  %v1028 = vsub.f32 %v1026, %v1027
  %v1029 = vand.u32 %v1028, 4294901760
  %1030 = vmatmul.mubr.f32.gmra.mrb[0].mxu0 %v1029
  %v1031 = vpop.f32.mrb[0].mxu0
  %v1032 = vadd.f32 %v938, %v1031
  %v1033 = vpop.f32.mrb[0].mxu0
  %v1034 = vadd.f32 %v938, %v1033
  %1035 = vdwg.mxu0
  %v1036 = vand.u32 %v920, 4294901760
  %v1037 = vsub.f32 %v920, %v1036
  %v1038 = vand.u32 %v1037, 4294901760
  %v1039 = vsub.f32 %v1037, %v1038
  %v1040 = vand.u32 %v1039, 4294901760
  %1041 = vmatprep.subr.mxu0 %v1040
  %v1042 = vand.u32 %v919, 4294901760
  %v1043 = vsub.f32 %v919, %v1042
  %v1044 = vand.u32 %v1043, 4294901760
  %v1045 = vsub.f32 %v1043, %v1044
  %v1046 = vand.u32 %v1045, 4294901760
  %1047 = vmatpush1.msra.mxu0 %v1046
  %v1048 = vand.u32 %v922, 4294901760
  %v1049 = vsub.f32 %v922, %v1048
  %v1050 = vand.u32 %v1049, 4294901760
  %v1051 = vsub.f32 %v1049, %v1050
  %v1052 = vand.u32 %v1051, 4294901760
  %1053 = vmatprep.subr.mxu0 %v1052
  %v1054 = vand.u32 %v921, 4294901760
  %v1055 = vsub.f32 %v921, %v1054
  %v1056 = vand.u32 %v1055, 4294901760
  %v1057 = vsub.f32 %v1055, %v1056
  %v1058 = vand.u32 %v1057, 4294901760
  %1059 = vmatpush1.msra.mxu0 %v1058
  %v1060 = vand.u32 %v924, 4294901760
  %v1061 = vsub.f32 %v924, %v1060
  %v1062 = vand.u32 %v1061, 4294901760
  %v1063 = vsub.f32 %v1061, %v1062
  %v1064 = vand.u32 %v1063, 4294901760
  %1065 = vmatprep.subr.mxu0 %v1064
  %v1066 = vand.u32 %v923, 4294901760
  %v1067 = vsub.f32 %v923, %v1066
  %v1068 = vand.u32 %v1067, 4294901760
  %v1069 = vsub.f32 %v1067, %v1068
  %v1070 = vand.u32 %v1069, 4294901760
  %1071 = vmatpush1.msra.mxu0 %v1070
  %v1072 = vand.u32 %v926, 4294901760
  %v1073 = vsub.f32 %v926, %v1072
  %v1074 = vand.u32 %v1073, 4294901760
  %v1075 = vsub.f32 %v1073, %v1074
  %v1076 = vand.u32 %v1075, 4294901760
  %1077 = vmatprep.subr.mxu0 %v1076
  %v1078 = vand.u32 %v925, 4294901760
  %v1079 = vsub.f32 %v925, %v1078
  %v1080 = vand.u32 %v1079, 4294901760
  %v1081 = vsub.f32 %v1079, %v1080
  %v1082 = vand.u32 %v1081, 4294901760
  %1083 = vmatpush1.msra.mxu0 %v1082
  %v1084 = vand.u32 %v928, 4294901760
  %v1085 = vsub.f32 %v928, %v1084
  %v1086 = vand.u32 %v1085, 4294901760
  %v1087 = vsub.f32 %v1085, %v1086
  %v1088 = vand.u32 %v1087, 4294901760
  %1089 = vmatprep.subr.mxu0 %v1088
  %v1090 = vand.u32 %v927, 4294901760
  %v1091 = vsub.f32 %v927, %v1090
  %v1092 = vand.u32 %v1091, 4294901760
  %v1093 = vsub.f32 %v1091, %v1092
  %v1094 = vand.u32 %v1093, 4294901760
  %1095 = vmatpush1.msra.mxu0 %v1094
  %v1096 = vand.u32 %v930, 4294901760
  %v1097 = vsub.f32 %v930, %v1096
  %v1098 = vand.u32 %v1097, 4294901760
  %v1099 = vsub.f32 %v1097, %v1098
  %v1100 = vand.u32 %v1099, 4294901760
  %1101 = vmatprep.subr.mxu0 %v1100
  %v1102 = vand.u32 %v929, 4294901760
  %v1103 = vsub.f32 %v929, %v1102
  %v1104 = vand.u32 %v1103, 4294901760
  %v1105 = vsub.f32 %v1103, %v1104
  %v1106 = vand.u32 %v1105, 4294901760
  %1107 = vmatpush1.msra.mxu0 %v1106
  %v1108 = vand.u32 %v932, 4294901760
  %v1109 = vsub.f32 %v932, %v1108
  %v1110 = vand.u32 %v1109, 4294901760
  %v1111 = vsub.f32 %v1109, %v1110
  %v1112 = vand.u32 %v1111, 4294901760
  %1113 = vmatprep.subr.mxu0 %v1112
  %v1114 = vand.u32 %v931, 4294901760
  %v1115 = vsub.f32 %v931, %v1114
  %v1116 = vand.u32 %v1115, 4294901760
  %v1117 = vsub.f32 %v1115, %v1116
  %v1118 = vand.u32 %v1117, 4294901760
  %1119 = vmatpush1.msra.mxu0 %v1118
  %v1120 = vand.u32 %v934, 4294901760
  %v1121 = vsub.f32 %v934, %v1120
  %v1122 = vand.u32 %v1121, 4294901760
  %v1123 = vsub.f32 %v1121, %v1122
  %v1124 = vand.u32 %v1123, 4294901760
  %1125 = vmatprep.subr.mxu0 %v1124
  %v1126 = vand.u32 %v933, 4294901760
  %v1127 = vsub.f32 %v933, %v1126
  %v1128 = vand.u32 %v1127, 4294901760
  %v1129 = vsub.f32 %v1127, %v1128
  %v1130 = vand.u32 %v1129, 4294901760
  %1131 = vmatpush1.msra.mxu0 %v1130
  %1132 = vmatprep.subr.mxu0 0.0
  %1133 = vmatpush1.msra.mxu0 0.0
  %1134 = vmatprep.subr.mxu0 0.0
  %1135 = vmatpush1.msra.mxu0 0.0
  %1136 = vmatprep.subr.mxu0 0.0
  %1137 = vmatpush1.msra.mxu0 0.0
  %1138 = vmatprep.subr.mxu0 0.0
  %1139 = vmatpush1.msra.mxu0 0.0
  %1140 = vmatprep.subr.mxu0 0.0
  %1141 = vmatpush1.msra.mxu0 0.0
  %1142 = vmatprep.subr.mxu0 0.0
  %1143 = vmatpush1.msra.mxu0 0.0
  %1144 = vmatprep.subr.mxu0 0.0
  %1145 = vmatpush1.msra.mxu0 0.0
  %1146 = vmatprep.subr.mxu0 0.0
  %1147 = vmatpush1.msra.mxu0 0.0
  %1148 = vmatprep.subr.mxu0 0.0
  %1149 = vmatpush1.msra.mxu0 0.0
  %1150 = vmatprep.subr.mxu0 0.0
  %1151 = vmatpush1.msra.mxu0 0.0
  %1152 = vmatprep.subr.mxu0 0.0
  %1153 = vmatpush1.msra.mxu0 0.0
  %1154 = vmatprep.subr.mxu0 0.0
  %1155 = vmatpush1.msra.mxu0 0.0
  %1156 = vmatprep.subr.mxu0 0.0
  %1157 = vmatpush1.msra.mxu0 0.0
  %1158 = vmatprep.subr.mxu0 0.0
  %1159 = vmatpush1.msra.mxu0 0.0
  %1160 = vmatprep.subr.mxu0 0.0
  %1161 = vmatpush1.msra.mxu0 0.0
  %1162 = vmatprep.subr.mxu0 0.0
  %1163 = vmatpush1.msra.mxu0 0.0
  %1164 = vmatprep.subr.mxu0 0.0
  %1165 = vmatpush1.msra.mxu0 0.0
  %1166 = vmatprep.subr.mxu0 0.0
  %1167 = vmatpush1.msra.mxu0 0.0
  %1168 = vmatprep.subr.mxu0 0.0
  %1169 = vmatpush1.msra.mxu0 0.0
  %1170 = vmatprep.subr.mxu0 0.0
  %1171 = vmatpush1.msra.mxu0 0.0
  %1172 = vmatprep.subr.mxu0 0.0
  %1173 = vmatpush1.msra.mxu0 0.0
  %1174 = vmatprep.subr.mxu0 0.0
  %1175 = vmatpush1.msra.mxu0 0.0
  %1176 = vmatprep.subr.mxu0 0.0
  %1177 = vmatpush1.msra.mxu0 0.0
  %1178 = vmatprep.subr.mxu0 0.0
  %1179 = vmatpush1.msra.mxu0 0.0
  %1180 = vmatprep.mubr.f32.mxu0 0.0
  %v1181 = vand.u32 %v942, 4294901760
  %1182 = vmatmul.mubr.f32.gmra.mrb[0].mxu0 %v1181
  %v1183 = vpop.f32.mrb[0].mxu0
  %v1184 = vadd.f32 %v1032, %v1183
  %v1185 = vpop.f32.mrb[0].mxu0
  %v1186 = vadd.f32 %v1034, %v1185
  %1187 = vdwg.mxu0
  %v1188 = vand.u32 %v920, 4294901760
  %v1189 = vsub.f32 %v920, %v1188
  %1190 = vmatprep.subr.mxu0 %v1189
  %v1191 = vand.u32 %v919, 4294901760
  %v1192 = vsub.f32 %v919, %v1191
  %1193 = vmatpush1.msra.mxu0 %v1192
  %v1194 = vand.u32 %v922, 4294901760
  %v1195 = vsub.f32 %v922, %v1194
  %1196 = vmatprep.subr.mxu0 %v1195
  %v1197 = vand.u32 %v921, 4294901760
  %v1198 = vsub.f32 %v921, %v1197
  %1199 = vmatpush1.msra.mxu0 %v1198
  %v1200 = vand.u32 %v924, 4294901760
  %v1201 = vsub.f32 %v924, %v1200
  %1202 = vmatprep.subr.mxu0 %v1201
  %v1203 = vand.u32 %v923, 4294901760
  %v1204 = vsub.f32 %v923, %v1203
  %1205 = vmatpush1.msra.mxu0 %v1204
  %v1206 = vand.u32 %v926, 4294901760
  %v1207 = vsub.f32 %v926, %v1206
  %1208 = vmatprep.subr.mxu0 %v1207
  %v1209 = vand.u32 %v925, 4294901760
  %v1210 = vsub.f32 %v925, %v1209
  %1211 = vmatpush1.msra.mxu0 %v1210
  %v1212 = vand.u32 %v928, 4294901760
  %v1213 = vsub.f32 %v928, %v1212
  %1214 = vmatprep.subr.mxu0 %v1213
  %v1215 = vand.u32 %v927, 4294901760
  %v1216 = vsub.f32 %v927, %v1215
  %1217 = vmatpush1.msra.mxu0 %v1216
  %v1218 = vand.u32 %v930, 4294901760
  %v1219 = vsub.f32 %v930, %v1218
  %1220 = vmatprep.subr.mxu0 %v1219
  %v1221 = vand.u32 %v929, 4294901760
  %v1222 = vsub.f32 %v929, %v1221
  %1223 = vmatpush1.msra.mxu0 %v1222
  %v1224 = vand.u32 %v932, 4294901760
  %v1225 = vsub.f32 %v932, %v1224
  %1226 = vmatprep.subr.mxu0 %v1225
  %v1227 = vand.u32 %v931, 4294901760
  %v1228 = vsub.f32 %v931, %v1227
  %1229 = vmatpush1.msra.mxu0 %v1228
  %v1230 = vand.u32 %v934, 4294901760
  %v1231 = vsub.f32 %v934, %v1230
  %1232 = vmatprep.subr.mxu0 %v1231
  %v1233 = vand.u32 %v933, 4294901760
  %v1234 = vsub.f32 %v933, %v1233
  %1235 = vmatpush1.msra.mxu0 %v1234
  %1236 = vmatprep.subr.mxu0 0.0
  %1237 = vmatpush1.msra.mxu0 0.0
  %1238 = vmatprep.subr.mxu0 0.0
  %1239 = vmatpush1.msra.mxu0 0.0
  %1240 = vmatprep.subr.mxu0 0.0
  %1241 = vmatpush1.msra.mxu0 0.0
  %1242 = vmatprep.subr.mxu0 0.0
  %1243 = vmatpush1.msra.mxu0 0.0
  %1244 = vmatprep.subr.mxu0 0.0
  %1245 = vmatpush1.msra.mxu0 0.0
  %1246 = vmatprep.subr.mxu0 0.0
  %1247 = vmatpush1.msra.mxu0 0.0
  %1248 = vmatprep.subr.mxu0 0.0
  %1249 = vmatpush1.msra.mxu0 0.0
  %1250 = vmatprep.subr.mxu0 0.0
  %1251 = vmatpush1.msra.mxu0 0.0
  %1252 = vmatprep.subr.mxu0 0.0
  %1253 = vmatpush1.msra.mxu0 0.0
  %1254 = vmatprep.subr.mxu0 0.0
  %1255 = vmatpush1.msra.mxu0 0.0
  %1256 = vmatprep.subr.mxu0 0.0
  %1257 = vmatpush1.msra.mxu0 0.0
  %1258 = vmatprep.subr.mxu0 0.0
  %1259 = vmatpush1.msra.mxu0 0.0
  %1260 = vmatprep.subr.mxu0 0.0
  %1261 = vmatpush1.msra.mxu0 0.0
  %1262 = vmatprep.subr.mxu0 0.0
  %1263 = vmatpush1.msra.mxu0 0.0
  %1264 = vmatprep.subr.mxu0 0.0
  %1265 = vmatpush1.msra.mxu0 0.0
  %1266 = vmatprep.subr.mxu0 0.0
  %1267 = vmatpush1.msra.mxu0 0.0
  %1268 = vmatprep.subr.mxu0 0.0
  %1269 = vmatpush1.msra.mxu0 0.0
  %1270 = vmatprep.subr.mxu0 0.0
  %1271 = vmatpush1.msra.mxu0 0.0
  %1272 = vmatprep.subr.mxu0 0.0
  %1273 = vmatpush1.msra.mxu0 0.0
  %1274 = vmatprep.subr.mxu0 0.0
  %1275 = vmatpush1.msra.mxu0 0.0
  %1276 = vmatprep.subr.mxu0 0.0
  %1277 = vmatpush1.msra.mxu0 0.0
  %1278 = vmatprep.subr.mxu0 0.0
  %1279 = vmatpush1.msra.mxu0 0.0
  %1280 = vmatprep.subr.mxu0 0.0
  %1281 = vmatpush1.msra.mxu0 0.0
  %1282 = vmatprep.subr.mxu0 0.0
  %1283 = vmatpush1.msra.mxu0 0.0
  %1284 = vmatprep.mubr.f32.mxu0 0.0
  %v1285 = vand.u32 %v942, 4294901760
  %v1286 = vsub.f32 %v942, %v1285
  %1287 = vmatmul.mubr.f32.gmra.mrb[0].mxu0 %v1286
  %v1288 = vpop.f32.mrb[0].mxu0
  %v1289 = vadd.f32 %v1184, %v1288
  %v1290 = vpop.f32.mrb[0].mxu0
  %v1291 = vadd.f32 %v1186, %v1290
  %1292 = vdwg.mxu0
  %v1293 = vand.u32 %v920, 4294901760
  %1294 = vmatprep.subr.mxu0 %v1293
  %v1295 = vand.u32 %v919, 4294901760
  %1296 = vmatpush1.msra.mxu0 %v1295
  %v1297 = vand.u32 %v922, 4294901760
  %1298 = vmatprep.subr.mxu0 %v1297
  %v1299 = vand.u32 %v921, 4294901760
  %1300 = vmatpush1.msra.mxu0 %v1299
  %v1301 = vand.u32 %v924, 4294901760
  %1302 = vmatprep.subr.mxu0 %v1301
  %v1303 = vand.u32 %v923, 4294901760
  %1304 = vmatpush1.msra.mxu0 %v1303
  %v1305 = vand.u32 %v926, 4294901760
  %1306 = vmatprep.subr.mxu0 %v1305
  %v1307 = vand.u32 %v925, 4294901760
  %1308 = vmatpush1.msra.mxu0 %v1307
  %v1309 = vand.u32 %v928, 4294901760
  %1310 = vmatprep.subr.mxu0 %v1309
  %v1311 = vand.u32 %v927, 4294901760
  %1312 = vmatpush1.msra.mxu0 %v1311
  %v1313 = vand.u32 %v930, 4294901760
  %1314 = vmatprep.subr.mxu0 %v1313
  %v1315 = vand.u32 %v929, 4294901760
  %1316 = vmatpush1.msra.mxu0 %v1315
  %v1317 = vand.u32 %v932, 4294901760
  %1318 = vmatprep.subr.mxu0 %v1317
  %v1319 = vand.u32 %v931, 4294901760
  %1320 = vmatpush1.msra.mxu0 %v1319
  %v1321 = vand.u32 %v934, 4294901760
  %1322 = vmatprep.subr.mxu0 %v1321
  %v1323 = vand.u32 %v933, 4294901760
  %1324 = vmatpush1.msra.mxu0 %v1323
  %1325 = vmatprep.subr.mxu0 0.0
  %1326 = vmatpush1.msra.mxu0 0.0
  %1327 = vmatprep.subr.mxu0 0.0
  %1328 = vmatpush1.msra.mxu0 0.0
  %1329 = vmatprep.subr.mxu0 0.0
  %1330 = vmatpush1.msra.mxu0 0.0
  %1331 = vmatprep.subr.mxu0 0.0
  %1332 = vmatpush1.msra.mxu0 0.0
  %1333 = vmatprep.subr.mxu0 0.0
  %1334 = vmatpush1.msra.mxu0 0.0
  %1335 = vmatprep.subr.mxu0 0.0
  %1336 = vmatpush1.msra.mxu0 0.0
  %1337 = vmatprep.subr.mxu0 0.0
  %1338 = vmatpush1.msra.mxu0 0.0
  %1339 = vmatprep.subr.mxu0 0.0
  %1340 = vmatpush1.msra.mxu0 0.0
  %1341 = vmatprep.subr.mxu0 0.0
  %1342 = vmatpush1.msra.mxu0 0.0
  %1343 = vmatprep.subr.mxu0 0.0
  %1344 = vmatpush1.msra.mxu0 0.0
  %1345 = vmatprep.subr.mxu0 0.0
  %1346 = vmatpush1.msra.mxu0 0.0
  %1347 = vmatprep.subr.mxu0 0.0
  %1348 = vmatpush1.msra.mxu0 0.0
  %1349 = vmatprep.subr.mxu0 0.0
  %1350 = vmatpush1.msra.mxu0 0.0
  %1351 = vmatprep.subr.mxu0 0.0
  %1352 = vmatpush1.msra.mxu0 0.0
  %1353 = vmatprep.subr.mxu0 0.0
  %1354 = vmatpush1.msra.mxu0 0.0
  %1355 = vmatprep.subr.mxu0 0.0
  %1356 = vmatpush1.msra.mxu0 0.0
  %1357 = vmatprep.subr.mxu0 0.0
  %1358 = vmatpush1.msra.mxu0 0.0
  %1359 = vmatprep.subr.mxu0 0.0
  %1360 = vmatpush1.msra.mxu0 0.0
  %1361 = vmatprep.subr.mxu0 0.0
  %1362 = vmatpush1.msra.mxu0 0.0
  %1363 = vmatprep.subr.mxu0 0.0
  %1364 = vmatpush1.msra.mxu0 0.0
  %1365 = vmatprep.subr.mxu0 0.0
  %1366 = vmatpush1.msra.mxu0 0.0
  %1367 = vmatprep.subr.mxu0 0.0
  %1368 = vmatpush1.msra.mxu0 0.0
  %1369 = vmatprep.subr.mxu0 0.0
  %1370 = vmatpush1.msra.mxu0 0.0
  %1371 = vmatprep.subr.mxu0 0.0
  %1372 = vmatpush1.msra.mxu0 0.0
  %1373 = vmatprep.mubr.f32.mxu0 0.0
  %v1374 = vand.u32 %v942, 4294901760
  %v1375 = vsub.f32 %v942, %v1374
  %v1376 = vand.u32 %v1375, 4294901760
  %1377 = vmatmul.mubr.f32.gmra.mrb[0].mxu0 %v1376
  %v1378 = vpop.f32.mrb[0].mxu0
  %v1379 = vadd.f32 %v1289, %v1378
  %v1380 = vpop.f32.mrb[0].mxu0
  %v1381 = vadd.f32 %v1291, %v1380
  %1382 = vdwg.mxu0
  %v1383 = vand.u32 %v920, 4294901760
  %v1384 = vsub.f32 %v920, %v1383
  %v1385 = vand.u32 %v1384, 4294901760
  %1386 = vmatprep.subr.mxu0 %v1385
  %v1387 = vand.u32 %v919, 4294901760
  %v1388 = vsub.f32 %v919, %v1387
  %v1389 = vand.u32 %v1388, 4294901760
  %1390 = vmatpush1.msra.mxu0 %v1389
  %v1391 = vand.u32 %v922, 4294901760
  %v1392 = vsub.f32 %v922, %v1391
  %v1393 = vand.u32 %v1392, 4294901760
  %1394 = vmatprep.subr.mxu0 %v1393
  %v1395 = vand.u32 %v921, 4294901760
  %v1396 = vsub.f32 %v921, %v1395
  %v1397 = vand.u32 %v1396, 4294901760
  %1398 = vmatpush1.msra.mxu0 %v1397
  %v1399 = vand.u32 %v924, 4294901760
  %v1400 = vsub.f32 %v924, %v1399
  %v1401 = vand.u32 %v1400, 4294901760
  %1402 = vmatprep.subr.mxu0 %v1401
  %v1403 = vand.u32 %v923, 4294901760
  %v1404 = vsub.f32 %v923, %v1403
  %v1405 = vand.u32 %v1404, 4294901760
  %1406 = vmatpush1.msra.mxu0 %v1405
  %v1407 = vand.u32 %v926, 4294901760
  %v1408 = vsub.f32 %v926, %v1407
  %v1409 = vand.u32 %v1408, 4294901760
  %1410 = vmatprep.subr.mxu0 %v1409
  %v1411 = vand.u32 %v925, 4294901760
  %v1412 = vsub.f32 %v925, %v1411
  %v1413 = vand.u32 %v1412, 4294901760
  %1414 = vmatpush1.msra.mxu0 %v1413
  %v1415 = vand.u32 %v928, 4294901760
  %v1416 = vsub.f32 %v928, %v1415
  %v1417 = vand.u32 %v1416, 4294901760
  %1418 = vmatprep.subr.mxu0 %v1417
  %v1419 = vand.u32 %v927, 4294901760
  %v1420 = vsub.f32 %v927, %v1419
  %v1421 = vand.u32 %v1420, 4294901760
  %1422 = vmatpush1.msra.mxu0 %v1421
  %v1423 = vand.u32 %v930, 4294901760
  %v1424 = vsub.f32 %v930, %v1423
  %v1425 = vand.u32 %v1424, 4294901760
  %1426 = vmatprep.subr.mxu0 %v1425
  %v1427 = vand.u32 %v929, 4294901760
  %v1428 = vsub.f32 %v929, %v1427
  %v1429 = vand.u32 %v1428, 4294901760
  %1430 = vmatpush1.msra.mxu0 %v1429
  %v1431 = vand.u32 %v932, 4294901760
  %v1432 = vsub.f32 %v932, %v1431
  %v1433 = vand.u32 %v1432, 4294901760
  %1434 = vmatprep.subr.mxu0 %v1433
  %v1435 = vand.u32 %v931, 4294901760
  %v1436 = vsub.f32 %v931, %v1435
  %v1437 = vand.u32 %v1436, 4294901760
  %1438 = vmatpush1.msra.mxu0 %v1437
  %v1439 = vand.u32 %v934, 4294901760
  %v1440 = vsub.f32 %v934, %v1439
  %v1441 = vand.u32 %v1440, 4294901760
  %1442 = vmatprep.subr.mxu0 %v1441
  %v1443 = vand.u32 %v933, 4294901760
  %v1444 = vsub.f32 %v933, %v1443
  %v1445 = vand.u32 %v1444, 4294901760
  %1446 = vmatpush1.msra.mxu0 %v1445
  %1447 = vmatprep.subr.mxu0 0.0
  %1448 = vmatpush1.msra.mxu0 0.0
  %1449 = vmatprep.subr.mxu0 0.0
  %1450 = vmatpush1.msra.mxu0 0.0
  %1451 = vmatprep.subr.mxu0 0.0
  %1452 = vmatpush1.msra.mxu0 0.0
  %1453 = vmatprep.subr.mxu0 0.0
  %1454 = vmatpush1.msra.mxu0 0.0
  %1455 = vmatprep.subr.mxu0 0.0
  %1456 = vmatpush1.msra.mxu0 0.0
  %1457 = vmatprep.subr.mxu0 0.0
  %1458 = vmatpush1.msra.mxu0 0.0
  %1459 = vmatprep.subr.mxu0 0.0
  %1460 = vmatpush1.msra.mxu0 0.0
  %1461 = vmatprep.subr.mxu0 0.0
  %1462 = vmatpush1.msra.mxu0 0.0
  %1463 = vmatprep.subr.mxu0 0.0
  %1464 = vmatpush1.msra.mxu0 0.0
  %1465 = vmatprep.subr.mxu0 0.0
  %1466 = vmatpush1.msra.mxu0 0.0
  %1467 = vmatprep.subr.mxu0 0.0
  %1468 = vmatpush1.msra.mxu0 0.0
  %1469 = vmatprep.subr.mxu0 0.0
  %1470 = vmatpush1.msra.mxu0 0.0
  %1471 = vmatprep.subr.mxu0 0.0
  %1472 = vmatpush1.msra.mxu0 0.0
  %1473 = vmatprep.subr.mxu0 0.0
  %1474 = vmatpush1.msra.mxu0 0.0
  %1475 = vmatprep.subr.mxu0 0.0
  %1476 = vmatpush1.msra.mxu0 0.0
  %1477 = vmatprep.subr.mxu0 0.0
  %1478 = vmatpush1.msra.mxu0 0.0
  %1479 = vmatprep.subr.mxu0 0.0
  %1480 = vmatpush1.msra.mxu0 0.0
  %1481 = vmatprep.subr.mxu0 0.0
  %1482 = vmatpush1.msra.mxu0 0.0
  %1483 = vmatprep.subr.mxu0 0.0
  %1484 = vmatpush1.msra.mxu0 0.0
  %1485 = vmatprep.subr.mxu0 0.0
  %1486 = vmatpush1.msra.mxu0 0.0
  %1487 = vmatprep.subr.mxu0 0.0
  %1488 = vmatpush1.msra.mxu0 0.0
  %1489 = vmatprep.subr.mxu0 0.0
  %1490 = vmatpush1.msra.mxu0 0.0
  %1491 = vmatprep.subr.mxu0 0.0
  %1492 = vmatpush1.msra.mxu0 0.0
  %1493 = vmatprep.subr.mxu0 0.0
  %1494 = vmatpush1.msra.mxu0 0.0
  %1495 = vmatprep.mubr.f32.mxu0 0.0
  %v1496 = vand.u32 %v942, 4294901760
  %1497 = vmatmul.mubr.f32.gmra.mrb[0].mxu0 %v1496
  %v1498 = vpop.f32.mrb[0].mxu0
  %v1499 = vadd.f32 %v1379, %v1498
  %v1500 = vpop.f32.mrb[0].mxu0
  %v1501 = vadd.f32 %v1381, %v1500
  %1502 = vdwg.mxu0
  %v1503 = vand.u32 %v920, 4294901760
  %1504 = vmatprep.subr.mxu0 %v1503
  %v1505 = vand.u32 %v919, 4294901760
  %1506 = vmatpush1.msra.mxu0 %v1505
  %v1507 = vand.u32 %v922, 4294901760
  %1508 = vmatprep.subr.mxu0 %v1507
  %v1509 = vand.u32 %v921, 4294901760
  %1510 = vmatpush1.msra.mxu0 %v1509
  %v1511 = vand.u32 %v924, 4294901760
  %1512 = vmatprep.subr.mxu0 %v1511
  %v1513 = vand.u32 %v923, 4294901760
  %1514 = vmatpush1.msra.mxu0 %v1513
  %v1515 = vand.u32 %v926, 4294901760
  %1516 = vmatprep.subr.mxu0 %v1515
  %v1517 = vand.u32 %v925, 4294901760
  %1518 = vmatpush1.msra.mxu0 %v1517
  %v1519 = vand.u32 %v928, 4294901760
  %1520 = vmatprep.subr.mxu0 %v1519
  %v1521 = vand.u32 %v927, 4294901760
  %1522 = vmatpush1.msra.mxu0 %v1521
  %v1523 = vand.u32 %v930, 4294901760
  %1524 = vmatprep.subr.mxu0 %v1523
  %v1525 = vand.u32 %v929, 4294901760
  %1526 = vmatpush1.msra.mxu0 %v1525
  %v1527 = vand.u32 %v932, 4294901760
  %1528 = vmatprep.subr.mxu0 %v1527
  %v1529 = vand.u32 %v931, 4294901760
  %1530 = vmatpush1.msra.mxu0 %v1529
  %v1531 = vand.u32 %v934, 4294901760
  %1532 = vmatprep.subr.mxu0 %v1531
  %v1533 = vand.u32 %v933, 4294901760
  %1534 = vmatpush1.msra.mxu0 %v1533
  %1535 = vmatprep.subr.mxu0 0.0
  %1536 = vmatpush1.msra.mxu0 0.0
  %1537 = vmatprep.subr.mxu0 0.0
  %1538 = vmatpush1.msra.mxu0 0.0
  %1539 = vmatprep.subr.mxu0 0.0
  %1540 = vmatpush1.msra.mxu0 0.0
  %1541 = vmatprep.subr.mxu0 0.0
  %1542 = vmatpush1.msra.mxu0 0.0
  %1543 = vmatprep.subr.mxu0 0.0
  %1544 = vmatpush1.msra.mxu0 0.0
  %1545 = vmatprep.subr.mxu0 0.0
  %1546 = vmatpush1.msra.mxu0 0.0
  %1547 = vmatprep.subr.mxu0 0.0
  %1548 = vmatpush1.msra.mxu0 0.0
  %1549 = vmatprep.subr.mxu0 0.0
  %1550 = vmatpush1.msra.mxu0 0.0
  %1551 = vmatprep.subr.mxu0 0.0
  %1552 = vmatpush1.msra.mxu0 0.0
  %1553 = vmatprep.subr.mxu0 0.0
  %1554 = vmatpush1.msra.mxu0 0.0
  %1555 = vmatprep.subr.mxu0 0.0
  %1556 = vmatpush1.msra.mxu0 0.0
  %1557 = vmatprep.subr.mxu0 0.0
  %1558 = vmatpush1.msra.mxu0 0.0
  %1559 = vmatprep.subr.mxu0 0.0
  %1560 = vmatpush1.msra.mxu0 0.0
  %1561 = vmatprep.subr.mxu0 0.0
  %1562 = vmatpush1.msra.mxu0 0.0
  %1563 = vmatprep.subr.mxu0 0.0
  %1564 = vmatpush1.msra.mxu0 0.0
  %1565 = vmatprep.subr.mxu0 0.0
  %1566 = vmatpush1.msra.mxu0 0.0
  %1567 = vmatprep.subr.mxu0 0.0
  %1568 = vmatpush1.msra.mxu0 0.0
  %1569 = vmatprep.subr.mxu0 0.0
  %1570 = vmatpush1.msra.mxu0 0.0
  %1571 = vmatprep.subr.mxu0 0.0
  %1572 = vmatpush1.msra.mxu0 0.0
  %1573 = vmatprep.subr.mxu0 0.0
  %1574 = vmatpush1.msra.mxu0 0.0
  %1575 = vmatprep.subr.mxu0 0.0
  %1576 = vmatpush1.msra.mxu0 0.0
  %1577 = vmatprep.subr.mxu0 0.0
  %1578 = vmatpush1.msra.mxu0 0.0
  %1579 = vmatprep.subr.mxu0 0.0
  %1580 = vmatpush1.msra.mxu0 0.0
  %1581 = vmatprep.subr.mxu0 0.0
  %1582 = vmatpush1.msra.mxu0 0.0
  %1583 = vmatprep.mubr.f32.mxu0 0.0
  %v1584 = vand.u32 %v942, 4294901760
  %1585 = vmatmul.mubr.f32.gmra.mrb[0].mxu0 %v1584
  %v1586 = vpop.f32.mrb[0].mxu0
  %v1587 = vadd.f32 %v1499, %v1586
  %v1588 = vpop.f32.mrb[0].mxu0
  %v1589 = vadd.f32 %v1501, %v1588
  %1590 = vdwg.mxu0
  %v1593 = vcombine.low %v1587, %v1589
  %v1595 = vunpack.c.l.s4 1983009808
  %v1596 = vunpack.c.0.s8 %v1595
  %v1597 = vlaneseq
  %v1598 = vshrl.u32 %v1597, 7
  %v1599 = vsub.s32 %v1596, %v1598
  %v1600 = vrot.slane %v1593, %v1599
  %1602 = vst [vmem:[%s5] sm:$0xf] %v1600
  // Predicated region
  $region22: #{interpolator_forward.1} parent=0 // pred_check
    _
  $region23: #{interpolator_forward.1} parent=0 // pred_check_branch
    %1604 = sbr.rel (0) target = $region25
  $region24: #{interpolator_forward.1} parent=0 // pred_region
    _
  $region25: #{interpolator_forward.1} parent=0 // pred_fallthru
    _
  // Predicated region
  $region26: #{interpolator_forward.1} parent=0 // pred_check
    _
  $region27: #{interpolator_forward.1} parent=0 // pred_check_branch
    %1606 = sbr.rel (0) target = $region29
  $region28: #{interpolator_forward.1} parent=0 // pred_region
    _
  $region29: #{interpolator_forward.1} parent=0 // pred_fallthru
    _

</llo_original>
